<compile_context>
chip_gen: v5e
topology: v5e:2x2
jax: 0.10.0
libtpu: 0.0.40
codegen_flags: <defaults>
</compile_context>

<pallas_src>
import functools

import jax
import jax.numpy as jnp
from jax.experimental import pallas as pl
from jax.experimental.pallas import tpu as pltpu

LANE = 128


def _round_up(n, m):
    return (n + m - 1) // m * m


def encoder_kernel(x_ref, w1_ref, b1_ref, w2_ref, b2_ref, eps_ref, out_ref):
    """One batch tile of the fused Encoder forward.

    x_ref   : (TB, F)      f32   input tile (cast to bf16 in-kernel)
    w1_ref  : (F, Hp)      bf16  FC_input weight (VMEM-resident across grid)
    b1_ref  : (1, Hp)      f32   FC_input bias (zero-padded)
    w2_ref  : (Hp, 2*Lp)   bf16  fused head: group0 = mean cols at [0:L] and
                                  duplicated at [Lp-L:Lp]; group1 = var cols at [0:L]
    b2_ref  : (1, 2*Lp)    f32   biases packed the same way
    eps_ref : (TB, Lp)     f32   U[0,1) noise, zero beyond lane L
    out_ref : (TB, 2*Lp)   f32   group0 = [z at 0:L | mean at Lp-L:Lp],
                                  group1 = [log_var at 0:L]
    """
    Lp = eps_ref.shape[-1]

    # FC_input + ReLU: bf16 MXU operands, f32 accumulation, f32 epilogue.
    x = x_ref[...].astype(w1_ref.dtype)
    h = jnp.dot(x, w1_ref[...], preferred_element_type=jnp.float32) + b1_ref[...]
    h = jnp.maximum(h, 0.0)

    # Fused FC_mean | FC_var head: one MXU matmul.
    ml = jnp.dot(h.astype(w2_ref.dtype), w2_ref[...],
                 preferred_element_type=jnp.float32) + b2_ref[...]
    mg = ml[:, :Lp]      # mean at lanes [0:L], duplicated at [Lp-L:Lp]
    lv = ml[:, Lp:]      # log_var at lanes [0:L], zeros elsewhere

    # Reparameterization.  eps is zero beyond lane L and lv is zero beyond
    # lane L (so std there = exp(0) = 1), hence in the z-group:
    #   lanes [0:L]     -> mean + std * eps      = z
    #   lanes [Lp-L:Lp] -> mean + 1 * 0          = mean   (packed mean output)
    zg = mg + jnp.exp(0.5 * lv) * eps_ref[...]

    # Two full-width, 128-aligned (lane-dense) stores.
    out_ref[:, 0:Lp] = zg.astype(out_ref.dtype)
    out_ref[:, Lp:2 * Lp] = lv.astype(out_ref.dtype)


def pack_params(params, mxu_dtype=jnp.bfloat16):
    """One-time packing of (W1, b1, Wm, bm, Wv, bv) into the kernel layout.

    Weights are [in_features, out_features] (transpose of PyTorch's [out, in]).
    Run once at init so the hot forward path contains no pad/cast ops.
    """
    w1, b1, wm, bm, wv, bv = params
    F, H = w1.shape
    L = wm.shape[1]
    Hp = _round_up(H, LANE)
    Lp = _round_up(L, LANE)
    if 2 * L > Lp:
        # TODO(synk): fall back to an unpacked 3*Lp output layout for latent_dim > 64.
        raise NotImplementedError("packed output layout requires latent_dim <= 64")
    m_off = Lp - L  # lane offset of the duplicated mean columns / packed mean output
    f32 = jnp.float32

    w1_p = jnp.zeros((F, Hp), mxu_dtype).at[:, :H].set(w1.astype(mxu_dtype))
    b1_p = jnp.zeros((1, Hp), f32).at[:, :H].set(b1.astype(f32).reshape(1, H))
    w2_p = (jnp.zeros((Hp, 2 * Lp), mxu_dtype)
            .at[:H, 0:L].set(wm.astype(mxu_dtype))
            .at[:H, m_off:m_off + L].set(wm.astype(mxu_dtype))
            .at[:H, Lp:Lp + L].set(wv.astype(mxu_dtype)))
    b2_p = (jnp.zeros((1, 2 * Lp), f32)
            .at[:, 0:L].set(bm.astype(f32).reshape(1, L))
            .at[:, m_off:m_off + L].set(bm.astype(f32).reshape(1, L))
            .at[:, Lp:Lp + L].set(bv.astype(f32).reshape(1, L)))
    return (w1_p, b1_p, w2_p, b2_p)


@functools.partial(jax.jit, static_argnames=("tile_b",))
def encoder_forward(x, packed, eps, *, tile_b=256):
    """Encoder forward from pre-packed params. Returns (z, mean, log_var), [B, L].

    tile_b guidance: 256 (default) for v6e/v7x; 128 already optimal on v5e.
    """
    w1_p, b1_p, w2_p, b2_p = packed
    B, F = x.shape
    Fw, Hp = w1_p.shape
    assert Fw == F, "packed W1 does not match input feature dim"
    Lp = w2_p.shape[1] // 2
    L = eps.shape[1]
    m_off = Lp - L

    # Batch tiling: 16-row multiples (bf16 sublane packing); pad only if needed.
    TB = _round_up(min(tile_b, B), 16)
    Bp = _round_up(B, TB)
    x_p = x if Bp == B else jnp.zeros((Bp, F), x.dtype).at[:B].set(x)
    # torch.rand_like noise is provided by the caller (deterministic); padded
    # to a lane group here (zeros beyond lane L drive the packed-mean trick).
    eps_p = jnp.zeros((Bp, Lp), jnp.float32).at[:B, :L].set(eps.astype(jnp.float32))

    grid = (Bp // TB,)
    flops = 2 * Bp * (F * Hp + Hp * 2 * Lp)
    bytes_accessed = (x_p.size * x_p.dtype.itemsize
                      + w1_p.size * 2 + w2_p.size * 2
                      + b1_p.size * 4 + b2_p.size * 4
                      + eps_p.size * 4 + Bp * 2 * Lp * 4)
    cost = pl.CostEstimate(flops=flops, transcendentals=Bp * Lp,
                           bytes_accessed=bytes_accessed)

    out = pl.pallas_call(
        encoder_kernel,
        out_shape=jax.ShapeDtypeStruct((Bp, 2 * Lp), jnp.float32),
        grid_spec=pltpu.PrefetchScalarGridSpec(
            num_scalar_prefetch=0,
            grid=grid,
            in_specs=[
                pl.BlockSpec((TB, F), lambda i: (i, 0)),        # x tile (f32)
                pl.BlockSpec((F, Hp), lambda i: (0, 0)),        # W1 (resident)
                pl.BlockSpec((1, Hp), lambda i: (0, 0)),        # b1 (resident)
                pl.BlockSpec((Hp, 2 * Lp), lambda i: (0, 0)),   # W_mean|W_var
                pl.BlockSpec((1, 2 * Lp), lambda i: (0, 0)),    # b_mean|b_var
                pl.BlockSpec((TB, Lp), lambda i: (i, 0)),       # eps tile
            ],
            out_specs=pl.BlockSpec((TB, 2 * Lp), lambda i: (i, 0)),
        ),
        compiler_params=pltpu.CompilerParams(
            dimension_semantics=("parallel",),   # v7x: shard batch over 2 TCs
            vmem_limit_bytes=32 << 20),
        cost_estimate=cost,
    )(x_p, w1_p, b1_p, w2_p, b2_p, eps_p)

    z = out[:B, 0:L].astype(x.dtype)
    mean = out[:B, m_off:m_off + L].astype(x.dtype)
    log_var = out[:B, Lp:Lp + L].astype(x.dtype)
    return z, mean, log_var


def init_params(key, input_dim, hidden_dim, latent_dim, dtype=jnp.float32):
    """Deterministic synthetic parameters (PyTorch Linear-style uniform init)."""
    ks = jax.random.split(key, 6)

    def linear(kw, kb, fan_in, fan_out):
        bound = 1.0 / jnp.sqrt(fan_in)
        w = jax.random.uniform(kw, (fan_in, fan_out), dtype, -bound, bound)
        b = jax.random.uniform(kb, (1, fan_out), dtype, -bound, bound)
        return w, b

    w1, b1 = linear(ks[0], ks[1], input_dim, hidden_dim)
    wm, bm = linear(ks[2], ks[3], hidden_dim, latent_dim)
    wv, bv = linear(ks[4], ks[5], hidden_dim, latent_dim)
    return (w1, b1, wm, bm, wv, bv)


def reference_forward(x, params, eps, mxu_dtype=None):
    """Pure-JAX reference mirroring the PyTorch module semantics.

    If mxu_dtype is given, matmul operands are cast to it (f32 accumulation),
    matching the kernel's bf16 MXU path exactly."""
    w1, b1, wm, bm, wv, bv = params
    cast = (lambda a: a.astype(mxu_dtype)) if mxu_dtype is not None else (lambda a: a)
    dot = lambda a, b: jnp.dot(cast(a), cast(b),
                               preferred_element_type=jnp.float32)
    h = jax.nn.relu(dot(x, w1) + b1)
    mean = dot(h, wm) + bm
    log_var = dot(h, wv) + bv
    std = jnp.exp(0.5 * log_var)
    z = mean + std * eps
    return z, mean, log_var


if __name__ == "__main__":
    # Module shapes: hidden_dim=400, latent_dim=20 (MNIST input 28*28=784);
    # small batch for the smoke test.
    batch, input_dim, hidden_dim_s, latent_dim_s = 16, 784, 400, 20

    key = jax.random.PRNGKey(0)
    k_x, k_p, k_eps = jax.random.split(key, 3)

    x = jax.random.normal(k_x, (batch, input_dim), dtype=jnp.float32)
    params = init_params(k_p, input_dim, hidden_dim_s, latent_dim_s)
    # torch.rand_like draws U[0,1); generated host-side for determinism and
    # passed into the kernel as an input.
    eps = jax.random.uniform(k_eps, (batch, latent_dim_s), dtype=jnp.float32)

    packed = jax.block_until_ready(pack_params(params))   # one-time packing

    z, mean, log_var = jax.block_until_ready(
        encoder_forward(x, packed, eps, tile_b=256))

    # Reference with the same bf16 MXU operands / f32 accumulation.
    z_r, m_r, lv_r = reference_forward(x, params, eps, mxu_dtype=jnp.bfloat16)
    assert jnp.allclose(z, z_r, atol=1e-3, rtol=1e-3)
    assert jnp.allclose(mean, m_r, atol=1e-3, rtol=1e-3)
    assert jnp.allclose(log_var, lv_r, atol=1e-3, rtol=1e-3)

    # Loose sanity check against full-f32 math (bf16 quantization headroom).
    z_f, m_f, lv_f = reference_forward(x, params, eps)
    assert jnp.allclose(z, z_f, atol=1e-1, rtol=1e-1)
    assert jnp.allclose(mean, m_f, atol=1e-1, rtol=1e-1)
    assert jnp.allclose(log_var, lv_f, atol=1e-1, rtol=1e-1)

    print("KERNEL_OK")
</pallas_src>

<mosaic_0001>
module attributes {stable_mosaic.version = 11 : i64} {
  func.func @encoder_kernel(%arg0: i32, %arg1: memref<16x784xf32, #tpu.memory_space<vmem>>, %arg2: memref<784x512xbf16, #tpu.memory_space<vmem>>, %arg3: memref<1x512xf32, #tpu.memory_space<vmem>>, %arg4: memref<512x256xbf16, #tpu.memory_space<vmem>>, %arg5: memref<1x256xf32, #tpu.memory_space<vmem>>, %arg6: memref<16x128xf32, #tpu.memory_space<vmem>>, %arg7: memref<16x256xf32, #tpu.memory_space<vmem>>) attributes {dimension_semantics = [#tpu.dimension_semantics<parallel>], iteration_bounds = array<i64: 1>, scalar_prefetch = 0 : i64, scratch_operands = 0 : i64, tpu.core_type = #tpu.core_type<tc>, window_params = [{transform_indices = @transform_0, window_bounds = array<i64: 16, 784>}, {pipeline_mode = #tpu.pipeline_mode<synchronous>, transform_indices = @transform_1, window_bounds = array<i64: 784, 512>}, {pipeline_mode = #tpu.pipeline_mode<synchronous>, transform_indices = @transform_2, window_bounds = array<i64: 1, 512>}, {pipeline_mode = #tpu.pipeline_mode<synchronous>, transform_indices = @transform_3, window_bounds = array<i64: 512, 256>}, {pipeline_mode = #tpu.pipeline_mode<synchronous>, transform_indices = @transform_4, window_bounds = array<i64: 1, 256>}, {transform_indices = @transform_5, window_bounds = array<i64: 16, 128>}, {transform_indices = @transform_6, window_bounds = array<i64: 16, 256>}]} {
    %c0 = arith.constant 0 : index
    %c0_0 = arith.constant 0 : index
    %0 = vector.load %arg1[%c0, %c0_0] : memref<16x784xf32, #tpu.memory_space<vmem>>, vector<16x784xf32>
    %1 = arith.truncf %0 : vector<16x784xf32> to vector<16x784xbf16>
    %c0_1 = arith.constant 0 : index
    %c0_2 = arith.constant 0 : index
    %2 = vector.load %arg2[%c0_1, %c0_2] : memref<784x512xbf16, #tpu.memory_space<vmem>>, vector<784x512xbf16>
    %cst = arith.constant dense<0.000000e+00> : vector<16x512xf32>
    %3 = tpu.matmul %1, %2, %cst {dimension_numbers = #tpu.dot_dimension_numbers<[1], [0], [0], [1], [0, 0, 1, 1], [], []>} : vector<16x784xbf16>, vector<784x512xbf16>, vector<16x512xf32> -> vector<16x512xf32>
    %c0_3 = arith.constant 0 : index
    %c0_4 = arith.constant 0 : index
    %4 = vector.load %arg3[%c0_3, %c0_4] : memref<1x512xf32, #tpu.memory_space<vmem>>, vector<1x512xf32>
    %5 = vector.broadcast %4 : vector<1x512xf32> to vector<16x512xf32>
    %6 = arith.addf %3, %5 : vector<16x512xf32>
    %cst_5 = arith.constant 0.000000e+00 : f32
    %7 = vector.broadcast %cst_5 : f32 to vector<16x512xf32>
    %8 = arith.maximumf %6, %7 : vector<16x512xf32>
    %9 = arith.truncf %8 : vector<16x512xf32> to vector<16x512xbf16>
    %c0_6 = arith.constant 0 : index
    %c0_7 = arith.constant 0 : index
    %10 = vector.load %arg4[%c0_6, %c0_7] : memref<512x256xbf16, #tpu.memory_space<vmem>>, vector<512x256xbf16>
    %cst_8 = arith.constant dense<0.000000e+00> : vector<16x256xf32>
    %11 = tpu.matmul %9, %10, %cst_8 {dimension_numbers = #tpu.dot_dimension_numbers<[1], [0], [0], [1], [0, 0, 1, 1], [], []>} : vector<16x512xbf16>, vector<512x256xbf16>, vector<16x256xf32> -> vector<16x256xf32>
    %c0_9 = arith.constant 0 : index
    %c0_10 = arith.constant 0 : index
    %12 = vector.load %arg5[%c0_9, %c0_10] : memref<1x256xf32, #tpu.memory_space<vmem>>, vector<1x256xf32>
    %13 = vector.broadcast %12 : vector<1x256xf32> to vector<16x256xf32>
    %14 = arith.addf %11, %13 : vector<16x256xf32>
    %15 = vector.extract_strided_slice %14 {offsets = [0, 0], sizes = [16, 128], strides = [1, 1]} : vector<16x256xf32> to vector<16x128xf32>
    %16 = vector.extract_strided_slice %14 {offsets = [0, 128], sizes = [16, 128], strides = [1, 1]} : vector<16x256xf32> to vector<16x128xf32>
    %cst_11 = arith.constant 5.000000e-01 : f32
    %17 = vector.broadcast %cst_11 : f32 to vector<16x128xf32>
    %18 = arith.mulf %17, %16 : vector<16x128xf32>
    %19 = math.exp %18 : vector<16x128xf32>
    %c0_12 = arith.constant 0 : index
    %c0_13 = arith.constant 0 : index
    %20 = vector.load %arg6[%c0_12, %c0_13] : memref<16x128xf32, #tpu.memory_space<vmem>>, vector<16x128xf32>
    %21 = arith.mulf %19, %20 : vector<16x128xf32>
    %22 = arith.addf %15, %21 : vector<16x128xf32>
    %c0_14 = arith.constant 0 : index
    %c0_15 = arith.constant 0 : index
    %23 = vector.load %arg7[%c0_14, %c0_15] : memref<16x256xf32, #tpu.memory_space<vmem>>, vector<16x128xf32>
    tpu.vector_store %arg7[%c0_14, %c0_15], %22 {strides = array<i32>} : memref<16x256xf32, #tpu.memory_space<vmem>>, vector<16x128xf32>,
    %c0_16 = arith.constant 0 : index
    %c128 = arith.constant 128 : index
    %24 = vector.load %arg7[%c0_16, %c128] : memref<16x256xf32, #tpu.memory_space<vmem>>, vector<16x128xf32>
    tpu.vector_store %arg7[%c0_16, %c128], %16 {strides = array<i32>} : memref<16x256xf32, #tpu.memory_space<vmem>>, vector<16x128xf32>,
    return
  }
  func.func @transform_0(%arg0: i32) -> (i32, i32) {
    %c0_i32 = arith.constant 0 : i32
    %c0_i32_0 = arith.constant 0 : i32
    return %arg0, %c0_i32 : i32, i32
  }
  func.func @transform_1(%arg0: i32) -> (i32, i32) {
    %c0_i32 = arith.constant 0 : i32
    %c0_i32_0 = arith.constant 0 : i32
    %c0_i32_1 = arith.constant 0 : i32
    return %c0_i32, %c0_i32_0 : i32, i32
  }
  func.func @transform_2(%arg0: i32) -> (i32, i32) {
    %c0_i32 = arith.constant 0 : i32
    %c0_i32_0 = arith.constant 0 : i32
    %c0_i32_1 = arith.constant 0 : i32
    return %c0_i32, %c0_i32_0 : i32, i32
  }
  func.func @transform_3(%arg0: i32) -> (i32, i32) {
    %c0_i32 = arith.constant 0 : i32
    %c0_i32_0 = arith.constant 0 : i32
    %c0_i32_1 = arith.constant 0 : i32
    return %c0_i32, %c0_i32_0 : i32, i32
  }
  func.func @transform_4(%arg0: i32) -> (i32, i32) {
    %c0_i32 = arith.constant 0 : i32
    %c0_i32_0 = arith.constant 0 : i32
    %c0_i32_1 = arith.constant 0 : i32
    return %c0_i32, %c0_i32_0 : i32, i32
  }
  func.func @transform_5(%arg0: i32) -> (i32, i32) {
    %c0_i32 = arith.constant 0 : i32
    %c0_i32_0 = arith.constant 0 : i32
    return %arg0, %c0_i32 : i32, i32
  }
  func.func @transform_6(%arg0: i32) -> (i32, i32) {
    %c0_i32 = arith.constant 0 : i32
    %c0_i32_0 = arith.constant 0 : i32
    return %arg0, %c0_i32 : i32, i32
  }
}

</mosaic_0001>

<llo_original>
// kernel: encoder_forward.1
$region0: #{encoder_forward.1}
  #allocation0 [shape = 'u32[]', space=smem, size = 0x4, offset = 0x4, fixed_abs, tag = 'smem constant byte address 0x4 - core index']
  #allocation1 [shape = 'u32[72,128]{1,0:T(1,128)}', space=vmem, size = 0x9000, scoped, tag = 'internal scratch']
  %s0 = inlined_call_operand.hbm [shape: f32[16,784], index: 0, kind: input, shape index: {}]
  %s1 = inlined_call_operand.hbm [shape: bf16[784,512], index: 1, kind: input, shape index: {}]
  %s2 = inlined_call_operand.vmem [shape: f32[1,512], index: 2, kind: input, shape index: {}]
  %s3 = inlined_call_operand.hbm [shape: bf16[512,256], index: 3, kind: input, shape index: {}]
  %s4 = inlined_call_operand.vmem [shape: f32[1,256], index: 4, kind: input, shape index: {}]
  %s5 = inlined_call_operand.vmem [shape: f32[16,128], index: 5, kind: input, shape index: {}]
  %s6 = inlined_call_operand.vmem [shape: f32[16,256], index: 6, kind: output, shape index: {}]
  %s7 = sld [smem:[#allocation0]]
  $region46: #{encoder_forward.1} parent=0
    _
  %s9 = ssub.s32 1, %s7
  %s10 = scalar_select 0, %s9, %s7
  $region1: #{encoder_forward.1} parent=0
    #allocation2 [shape = 'u8[57344]{0}', space=vmem, size = 0xe000, scoped, tag = 'input window, operand 0, single buffered']
    #allocation3 [shape = 's32[1]{0}', space=sflag, size = 0x4, scoped, tag = 'scoped memory for encoder_forward.1']
    #allocation4 [shape = 'u8[802816]{0}', space=vmem, size = 0xc4000, scoped, tag = 'input window, operand 1, single buffered']
    #allocation5 [shape = 's32[1]{0}', space=sflag, size = 0x4, scoped, tag = 'scoped memory for encoder_forward.1']
    #allocation6 [shape = 'u8[262144]{0}', space=vmem, size = 0x40000, scoped, tag = 'input window, operand 3, single buffered']
    %11 = vsyncpa [#allocation3], 0
    %12 = vsyncpa [#allocation5], 0
    // Predicated region
    $region2: #{encoder_forward.1} parent=1 // pred_check
      _
    $region3: #{encoder_forward.1} parent=1 // pred_check_branch
      %14 = sbr.rel (0) target = $region5
    $region4: #{encoder_forward.1} parent=1 // pred_region
      %16 = vsyncadd [#allocation3], 0
      %s17 = sshll.u32 %s0, 4
      %s18 = int_to_ptr.hbm [resolvable:$true] %s17
      %s19 = sshll.u32 [#allocation2], 4
      %s20 = int_to_ptr.vmem [resolvable:$true] %s19
      %25 = dma.hbm_to_vmem [thread:$0]  %s18, 1792, %s20, [#allocation3], 896, 896, 56
    $region5: #{encoder_forward.1} parent=1 // pred_fallthru
      _
    // Predicated region
    $region6: #{encoder_forward.1} parent=1 // pred_check
      _
    $region7: #{encoder_forward.1} parent=1 // pred_check_branch
      %27 = sbr.rel (0) target = $region9
    $region8: #{encoder_forward.1} parent=1 // pred_region
      %29 = vsyncadd [#allocation5], 0
      %s30 = sshll.u32 %s1, 4
      %s31 = int_to_ptr.hbm [resolvable:$true] %s30
      %s32 = sshll.u32 [#allocation4], 4
      %s33 = int_to_ptr.vmem [resolvable:$true] %s32
      %38 = dma.hbm_to_vmem [thread:$0]  %s31, 25088, %s33, [#allocation5], 256, 256, 16
    $region9: #{encoder_forward.1} parent=1 // pred_fallthru
      _
    // Predicated region
    $region10: #{encoder_forward.1} parent=1 // pred_check
      _
    $region11: #{encoder_forward.1} parent=1 // pred_check_branch
      %40 = sbr.rel (0) target = $region13
    $region12: #{encoder_forward.1} parent=1 // pred_region
      _
    $region13: #{encoder_forward.1} parent=1 // pred_fallthru
      _
    // Predicated region
    $region14: #{encoder_forward.1} parent=1 // pred_check
      _
    $region15: #{encoder_forward.1} parent=1 // pred_check_branch
      %42 = sbr.rel (0) target = $region17
    $region16: #{encoder_forward.1} parent=1 // pred_region
      %44 = vsyncadd [#allocation5], 0
      %s45 = sshll.u32 %s3, 4
      %s46 = int_to_ptr.hbm [resolvable:$true] %s45
      %s47 = sshll.u32 [#allocation6], 4
      %s48 = int_to_ptr.vmem [resolvable:$true] %s47
      %53 = dma.hbm_to_vmem [thread:$0]  %s46, 8192, %s48, [#allocation5], 128, 128, 8
    $region17: #{encoder_forward.1} parent=1 // pred_fallthru
      _
    // Predicated region
    $region18: #{encoder_forward.1} parent=1 // pred_check
      _
    $region19: #{encoder_forward.1} parent=1 // pred_check_branch
      %55 = sbr.rel (0) target = $region21
    $region20: #{encoder_forward.1} parent=1 // pred_region
      _
    $region21: #{encoder_forward.1} parent=1 // pred_fallthru
      _
    // Predicated region
    $region22: #{encoder_forward.1} parent=1 // pred_check
      _
    $region23: #{encoder_forward.1} parent=1 // pred_check_branch
      %57 = sbr.rel (0) target = $region25
    $region24: #{encoder_forward.1} parent=1 // pred_region
      _
    $region25: #{encoder_forward.1} parent=1 // pred_fallthru
      _
    // Predicated region
    $region26: #{encoder_forward.1} parent=1 // pred_check
      _
    $region27: #{encoder_forward.1} parent=1 // pred_check_branch
      %59 = sbr.rel (0) target = $region29
    $region28: #{encoder_forward.1} parent=1 // pred_region
      %61 = dma.done [#allocation3], 1792
    $region29: #{encoder_forward.1} parent=1 // pred_fallthru
      _
    // Predicated region
    $region30: #{encoder_forward.1} parent=1 // pred_check
      _
    $region31: #{encoder_forward.1} parent=1 // pred_check_branch
      %63 = sbr.rel (0) target = $region33
    $region32: #{encoder_forward.1} parent=1 // pred_region
      %65 = dma.done [#allocation5], 25088
    $region33: #{encoder_forward.1} parent=1 // pred_fallthru
      _
    // Predicated region
    $region34: #{encoder_forward.1} parent=1 // pred_check
      _
    $region35: #{encoder_forward.1} parent=1 // pred_check_branch
      %67 = sbr.rel (0) target = $region37
    $region36: #{encoder_forward.1} parent=1 // pred_region
      %69 = dma.done [#allocation5], 8192
    $region37: #{encoder_forward.1} parent=1 // pred_fallthru
      _
    %v71 = vld [vmem:[#allocation2] sm:$0xff]
    %v72 = vld [vmem:[#allocation2 + $0x8] sm:$0xff]
    %v73 = vld [vmem:[#allocation2 + $0x10] sm:$0xff]
    %v74 = vld [vmem:[#allocation2 + $0x18] sm:$0xff]
    %v75 = vld [vmem:[#allocation2 + $0x20] sm:$0xff]
    %v76 = vld [vmem:[#allocation2 + $0x28] sm:$0xff]
    %v77 = vld [vmem:[#allocation2 + $0x30] sm:$0xff]
    %v78 = vld [vmem:[#allocation2 + $0x38] sm:$0xff]
    %v79 = vld [vmem:[#allocation2 + $0x40] sm:$0xff]
    %v80 = vld [vmem:[#allocation2 + $0x48] sm:$0xff]
    %v81 = vld [vmem:[#allocation2 + $0x50] sm:$0xff]
    %v82 = vld [vmem:[#allocation2 + $0x58] sm:$0xff]
    %v83 = vld [vmem:[#allocation2 + $0x60] sm:$0xff]
    %v84 = vld [vmem:[#allocation2 + $0x68] sm:$0xff]
    %v85 = vpack.c.bf16 %v78, %v71
    %v86 = vpack.c.bf16 %v79, %v72
    %v87 = vpack.c.bf16 %v80, %v73
    %v88 = vpack.c.bf16 %v81, %v74
    %v89 = vpack.c.bf16 %v82, %v75
    %v90 = vpack.c.bf16 %v83, %v76
    %v91 = vpack.c.bf16 %v84, %v77
    %v92 = vld [vmem:[#allocation4] sm:$0xff]
    %v93 = vld [vmem:[#allocation4 + $0x8] sm:$0xff]
    %v94 = vld [vmem:[#allocation4 + $0x10] sm:$0xff]
    %v95 = vld [vmem:[#allocation4 + $0x18] sm:$0xff]
    %v96 = vld [vmem:[#allocation4 + $0x20] sm:$0xff]
    %v97 = vld [vmem:[#allocation4 + $0x28] sm:$0xff]
    %v98 = vld [vmem:[#allocation4 + $0x30] sm:$0xff]
    %v99 = vld [vmem:[#allocation4 + $0x38] sm:$0xff]
    %v100 = vld [vmem:[#allocation4 + $0x40] sm:$0xff]
    %v101 = vld [vmem:[#allocation4 + $0x48] sm:$0xff]
    %v102 = vld [vmem:[#allocation4 + $0x50] sm:$0xff]
    %v103 = vld [vmem:[#allocation4 + $0x58] sm:$0xff]
    %v104 = vld [vmem:[#allocation4 + $0x60] sm:$0xff]
    %v105 = vld [vmem:[#allocation4 + $0x68] sm:$0xff]
    %v106 = vld [vmem:[#allocation4 + $0x70] sm:$0xff]
    %v107 = vld [vmem:[#allocation4 + $0x78] sm:$0xff]
    %v108 = vld [vmem:[#allocation4 + $0x80] sm:$0xff]
    %v109 = vld [vmem:[#allocation4 + $0x88] sm:$0xff]
    %v110 = vld [vmem:[#allocation4 + $0x90] sm:$0xff]
    %v111 = vld [vmem:[#allocation4 + $0x98] sm:$0xff]
    %v112 = vld [vmem:[#allocation4 + $0xa0] sm:$0xff]
    %v113 = vld [vmem:[#allocation4 + $0xa8] sm:$0xff]
    %v114 = vld [vmem:[#allocation4 + $0xb0] sm:$0xff]
    %v115 = vld [vmem:[#allocation4 + $0xb8] sm:$0xff]
    %v116 = vld [vmem:[#allocation4 + $0xc0] sm:$0xff]
    %v117 = vld [vmem:[#allocation4 + $0xc8] sm:$0xff]
    %v118 = vld [vmem:[#allocation4 + $0xd0] sm:$0xff]
    %v119 = vld [vmem:[#allocation4 + $0xd8] sm:$0xff]
    %v120 = vld [vmem:[#allocation4 + $0xe0] sm:$0xff]
    %v121 = vld [vmem:[#allocation4 + $0xe8] sm:$0xff]
    %v122 = vld [vmem:[#allocation4 + $0xf0] sm:$0xff]
    %v123 = vld [vmem:[#allocation4 + $0xf8] sm:$0xff]
    %v124 = vld [vmem:[#allocation4 + $0x100] sm:$0xff]
    %v125 = vld [vmem:[#allocation4 + $0x108] sm:$0xff]
    %v126 = vld [vmem:[#allocation4 + $0x110] sm:$0xff]
    %v127 = vld [vmem:[#allocation4 + $0x118] sm:$0xff]
    %v128 = vld [vmem:[#allocation4 + $0x120] sm:$0xff]
    %v129 = vld [vmem:[#allocation4 + $0x128] sm:$0xff]
    %v130 = vld [vmem:[#allocation4 + $0x130] sm:$0xff]
    %v131 = vld [vmem:[#allocation4 + $0x138] sm:$0xff]
    %v132 = vld [vmem:[#allocation4 + $0x140] sm:$0xff]
    %v133 = vld [vmem:[#allocation4 + $0x148] sm:$0xff]
    %v134 = vld [vmem:[#allocation4 + $0x150] sm:$0xff]
    %v135 = vld [vmem:[#allocation4 + $0x158] sm:$0xff]
    %v136 = vld [vmem:[#allocation4 + $0x160] sm:$0xff]
    %v137 = vld [vmem:[#allocation4 + $0x168] sm:$0xff]
    %v138 = vld [vmem:[#allocation4 + $0x170] sm:$0xff]
    %v139 = vld [vmem:[#allocation4 + $0x178] sm:$0xff]
    %v140 = vld [vmem:[#allocation4 + $0x180] sm:$0xff]
    %v141 = vld [vmem:[#allocation4 + $0x188] sm:$0xff]
    %v142 = vld [vmem:[#allocation4 + $0x190] sm:$0xff]
    %v143 = vld [vmem:[#allocation4 + $0x198] sm:$0xff]
    %v144 = vld [vmem:[#allocation4 + $0x1a0] sm:$0xff]
    %v145 = vld [vmem:[#allocation4 + $0x1a8] sm:$0xff]
    %v146 = vld [vmem:[#allocation4 + $0x1b0] sm:$0xff]
    %v147 = vld [vmem:[#allocation4 + $0x1b8] sm:$0xff]
    %v148 = vld [vmem:[#allocation4 + $0x1c0] sm:$0xff]
    %v149 = vld [vmem:[#allocation4 + $0x1c8] sm:$0xff]
    %v150 = vld [vmem:[#allocation4 + $0x1d0] sm:$0xff]
    %v151 = vld [vmem:[#allocation4 + $0x1d8] sm:$0xff]
    %v152 = vld [vmem:[#allocation4 + $0x1e0] sm:$0xff]
    %v153 = vld [vmem:[#allocation4 + $0x1e8] sm:$0xff]
    %v154 = vld [vmem:[#allocation4 + $0x1f0] sm:$0xff]
    %v155 = vld [vmem:[#allocation4 + $0x1f8] sm:$0xff]
    %v156 = vld [vmem:[#allocation4 + $0x200] sm:$0xff]
    %v157 = vld [vmem:[#allocation4 + $0x208] sm:$0xff]
    %v158 = vld [vmem:[#allocation4 + $0x210] sm:$0xff]
    %v159 = vld [vmem:[#allocation4 + $0x218] sm:$0xff]
    %v160 = vld [vmem:[#allocation4 + $0x220] sm:$0xff]
    %v161 = vld [vmem:[#allocation4 + $0x228] sm:$0xff]
    %v162 = vld [vmem:[#allocation4 + $0x230] sm:$0xff]
    %v163 = vld [vmem:[#allocation4 + $0x238] sm:$0xff]
    %v164 = vld [vmem:[#allocation4 + $0x240] sm:$0xff]
    %v165 = vld [vmem:[#allocation4 + $0x248] sm:$0xff]
    %v166 = vld [vmem:[#allocation4 + $0x250] sm:$0xff]
    %v167 = vld [vmem:[#allocation4 + $0x258] sm:$0xff]
    %v168 = vld [vmem:[#allocation4 + $0x260] sm:$0xff]
    %v169 = vld [vmem:[#allocation4 + $0x268] sm:$0xff]
    %v170 = vld [vmem:[#allocation4 + $0x270] sm:$0xff]
    %v171 = vld [vmem:[#allocation4 + $0x278] sm:$0xff]
    %v172 = vld [vmem:[#allocation4 + $0x280] sm:$0xff]
    %v173 = vld [vmem:[#allocation4 + $0x288] sm:$0xff]
    %v174 = vld [vmem:[#allocation4 + $0x290] sm:$0xff]
    %v175 = vld [vmem:[#allocation4 + $0x298] sm:$0xff]
    %v176 = vld [vmem:[#allocation4 + $0x2a0] sm:$0xff]
    %v177 = vld [vmem:[#allocation4 + $0x2a8] sm:$0xff]
    %v178 = vld [vmem:[#allocation4 + $0x2b0] sm:$0xff]
    %v179 = vld [vmem:[#allocation4 + $0x2b8] sm:$0xff]
    %v180 = vld [vmem:[#allocation4 + $0x2c0] sm:$0xff]
    %v181 = vld [vmem:[#allocation4 + $0x2c8] sm:$0xff]
    %v182 = vld [vmem:[#allocation4 + $0x2d0] sm:$0xff]
    %v183 = vld [vmem:[#allocation4 + $0x2d8] sm:$0xff]
    %v184 = vld [vmem:[#allocation4 + $0x2e0] sm:$0xff]
    %v185 = vld [vmem:[#allocation4 + $0x2e8] sm:$0xff]
    %v186 = vld [vmem:[#allocation4 + $0x2f0] sm:$0xff]
    %v187 = vld [vmem:[#allocation4 + $0x2f8] sm:$0xff]
    %v188 = vld [vmem:[#allocation4 + $0x300] sm:$0xff]
    %v189 = vld [vmem:[#allocation4 + $0x308] sm:$0xff]
    %v190 = vld [vmem:[#allocation4 + $0x310] sm:$0xff]
    %v191 = vld [vmem:[#allocation4 + $0x318] sm:$0xff]
    %v192 = vld [vmem:[#allocation4 + $0x320] sm:$0xff]
    %v193 = vld [vmem:[#allocation4 + $0x328] sm:$0xff]
    %v194 = vld [vmem:[#allocation4 + $0x330] sm:$0xff]
    %v195 = vld [vmem:[#allocation4 + $0x338] sm:$0xff]
    %v196 = vld [vmem:[#allocation4 + $0x340] sm:$0xff]
    %v197 = vld [vmem:[#allocation4 + $0x348] sm:$0xff]
    %v198 = vld [vmem:[#allocation4 + $0x350] sm:$0xff]
    %v199 = vld [vmem:[#allocation4 + $0x358] sm:$0xff]
    %v200 = vld [vmem:[#allocation4 + $0x360] sm:$0xff]
    %v201 = vld [vmem:[#allocation4 + $0x368] sm:$0xff]
    %v202 = vld [vmem:[#allocation4 + $0x370] sm:$0xff]
    %v203 = vld [vmem:[#allocation4 + $0x378] sm:$0xff]
    %v204 = vld [vmem:[#allocation4 + $0x380] sm:$0xff]
    %v205 = vld [vmem:[#allocation4 + $0x388] sm:$0xff]
    %v206 = vld [vmem:[#allocation4 + $0x390] sm:$0xff]
    %v207 = vld [vmem:[#allocation4 + $0x398] sm:$0xff]
    %v208 = vld [vmem:[#allocation4 + $0x3a0] sm:$0xff]
    %v209 = vld [vmem:[#allocation4 + $0x3a8] sm:$0xff]
    %v210 = vld [vmem:[#allocation4 + $0x3b0] sm:$0xff]
    %v211 = vld [vmem:[#allocation4 + $0x3b8] sm:$0xff]
    %v212 = vld [vmem:[#allocation4 + $0x3c0] sm:$0xff]
    %v213 = vld [vmem:[#allocation4 + $0x3c8] sm:$0xff]
    %v214 = vld [vmem:[#allocation4 + $0x3d0] sm:$0xff]
    %v215 = vld [vmem:[#allocation4 + $0x3d8] sm:$0xff]
    %v216 = vld [vmem:[#allocation4 + $0x3e0] sm:$0xff]
    %v217 = vld [vmem:[#allocation4 + $0x3e8] sm:$0xff]
    %v218 = vld [vmem:[#allocation4 + $0x3f0] sm:$0xff]
    %v219 = vld [vmem:[#allocation4 + $0x3f8] sm:$0xff]
    %v220 = vld [vmem:[#allocation4 + $0x400] sm:$0xff]
    %v221 = vld [vmem:[#allocation4 + $0x408] sm:$0xff]
    %v222 = vld [vmem:[#allocation4 + $0x410] sm:$0xff]
    %v223 = vld [vmem:[#allocation4 + $0x418] sm:$0xff]
    %v224 = vld [vmem:[#allocation4 + $0x420] sm:$0xff]
    %v225 = vld [vmem:[#allocation4 + $0x428] sm:$0xff]
    %v226 = vld [vmem:[#allocation4 + $0x430] sm:$0xff]
    %v227 = vld [vmem:[#allocation4 + $0x438] sm:$0xff]
    %v228 = vld [vmem:[#allocation4 + $0x440] sm:$0xff]
    %v229 = vld [vmem:[#allocation4 + $0x448] sm:$0xff]
    %v230 = vld [vmem:[#allocation4 + $0x450] sm:$0xff]
    %v231 = vld [vmem:[#allocation4 + $0x458] sm:$0xff]
    %v232 = vld [vmem:[#allocation4 + $0x460] sm:$0xff]
    %v233 = vld [vmem:[#allocation4 + $0x468] sm:$0xff]
    %v234 = vld [vmem:[#allocation4 + $0x470] sm:$0xff]
    %v235 = vld [vmem:[#allocation4 + $0x478] sm:$0xff]
    %v236 = vld [vmem:[#allocation4 + $0x480] sm:$0xff]
    %v237 = vld [vmem:[#allocation4 + $0x488] sm:$0xff]
    %v238 = vld [vmem:[#allocation4 + $0x490] sm:$0xff]
    %v239 = vld [vmem:[#allocation4 + $0x498] sm:$0xff]
    %v240 = vld [vmem:[#allocation4 + $0x4a0] sm:$0xff]
    %v241 = vld [vmem:[#allocation4 + $0x4a8] sm:$0xff]
    %v242 = vld [vmem:[#allocation4 + $0x4b0] sm:$0xff]
    %v243 = vld [vmem:[#allocation4 + $0x4b8] sm:$0xff]
    %v244 = vld [vmem:[#allocation4 + $0x4c0] sm:$0xff]
    %v245 = vld [vmem:[#allocation4 + $0x4c8] sm:$0xff]
    %v246 = vld [vmem:[#allocation4 + $0x4d0] sm:$0xff]
    %v247 = vld [vmem:[#allocation4 + $0x4d8] sm:$0xff]
    %v248 = vld [vmem:[#allocation4 + $0x4e0] sm:$0xff]
    %v249 = vld [vmem:[#allocation4 + $0x4e8] sm:$0xff]
    %v250 = vld [vmem:[#allocation4 + $0x4f0] sm:$0xff]
    %v251 = vld [vmem:[#allocation4 + $0x4f8] sm:$0xff]
    %v252 = vld [vmem:[#allocation4 + $0x500] sm:$0xff]
    %v253 = vld [vmem:[#allocation4 + $0x508] sm:$0xff]
    %v254 = vld [vmem:[#allocation4 + $0x510] sm:$0xff]
    %v255 = vld [vmem:[#allocation4 + $0x518] sm:$0xff]
    %v256 = vld [vmem:[#allocation4 + $0x520] sm:$0xff]
    %v257 = vld [vmem:[#allocation4 + $0x528] sm:$0xff]
    %v258 = vld [vmem:[#allocation4 + $0x530] sm:$0xff]
    %v259 = vld [vmem:[#allocation4 + $0x538] sm:$0xff]
    %v260 = vld [vmem:[#allocation4 + $0x540] sm:$0xff]
    %v261 = vld [vmem:[#allocation4 + $0x548] sm:$0xff]
    %v262 = vld [vmem:[#allocation4 + $0x550] sm:$0xff]
    %v263 = vld [vmem:[#allocation4 + $0x558] sm:$0xff]
    %v264 = vld [vmem:[#allocation4 + $0x560] sm:$0xff]
    %v265 = vld [vmem:[#allocation4 + $0x568] sm:$0xff]
    %v266 = vld [vmem:[#allocation4 + $0x570] sm:$0xff]
    %v267 = vld [vmem:[#allocation4 + $0x578] sm:$0xff]
    %v268 = vld [vmem:[#allocation4 + $0x580] sm:$0xff]
    %v269 = vld [vmem:[#allocation4 + $0x588] sm:$0xff]
    %v270 = vld [vmem:[#allocation4 + $0x590] sm:$0xff]
    %v271 = vld [vmem:[#allocation4 + $0x598] sm:$0xff]
    %v272 = vld [vmem:[#allocation4 + $0x5a0] sm:$0xff]
    %v273 = vld [vmem:[#allocation4 + $0x5a8] sm:$0xff]
    %v274 = vld [vmem:[#allocation4 + $0x5b0] sm:$0xff]
    %v275 = vld [vmem:[#allocation4 + $0x5b8] sm:$0xff]
    %v276 = vld [vmem:[#allocation4 + $0x5c0] sm:$0xff]
    %v277 = vld [vmem:[#allocation4 + $0x5c8] sm:$0xff]
    %v278 = vld [vmem:[#allocation4 + $0x5d0] sm:$0xff]
    %v279 = vld [vmem:[#allocation4 + $0x5d8] sm:$0xff]
    %v280 = vld [vmem:[#allocation4 + $0x5e0] sm:$0xff]
    %v281 = vld [vmem:[#allocation4 + $0x5e8] sm:$0xff]
    %v282 = vld [vmem:[#allocation4 + $0x5f0] sm:$0xff]
    %v283 = vld [vmem:[#allocation4 + $0x5f8] sm:$0xff]
    %v284 = vld [vmem:[#allocation4 + $0x600] sm:$0xff]
    %v285 = vld [vmem:[#allocation4 + $0x608] sm:$0xff]
    %v286 = vld [vmem:[#allocation4 + $0x610] sm:$0xff]
    %v287 = vld [vmem:[#allocation4 + $0x618] sm:$0xff]
    %v288 = vld [vmem:[%s2] sm:$0xf]
    %v290 = vperm.slane %v288, 0
    %v291 = vperm.slane %v288, 1
    %v292 = vperm.slane %v288, 2
    %v293 = vperm.slane %v288, 3
    %v494 = vunpack.c.l.b16 %v92
    %v495 = vunpack.c.h.b16 %v92
    %v496 = vunpack.c.l.b16 %v93
    %v497 = vunpack.c.h.b16 %v93
    %v498 = vunpack.c.l.b16 %v94
    %v499 = vunpack.c.h.b16 %v94
    %v500 = vunpack.c.l.b16 %v95
    %v501 = vunpack.c.h.b16 %v95
    %v502 = vunpack.c.l.b16 %v96
    %v503 = vunpack.c.h.b16 %v96
    %v504 = vunpack.c.l.b16 %v97
    %v505 = vunpack.c.h.b16 %v97
    %v506 = vunpack.c.l.b16 %v98
    %v507 = vunpack.c.h.b16 %v98
    %v508 = vunpack.c.l.b16 %v99
    %v509 = vunpack.c.h.b16 %v99
    %v510 = vunpack.c.l.b16 %v100
    %v511 = vunpack.c.h.b16 %v100
    %v512 = vunpack.c.l.b16 %v101
    %v513 = vunpack.c.h.b16 %v101
    %v514 = vunpack.c.l.b16 %v102
    %v515 = vunpack.c.h.b16 %v102
    %v516 = vunpack.c.l.b16 %v103
    %v517 = vunpack.c.h.b16 %v103
    %v518 = vunpack.c.l.b16 %v104
    %v519 = vunpack.c.h.b16 %v104
    %v520 = vunpack.c.l.b16 %v105
    %v521 = vunpack.c.h.b16 %v105
    %v522 = vunpack.c.l.b16 %v106
    %v523 = vunpack.c.h.b16 %v106
    %v524 = vunpack.c.l.b16 %v107
    %v525 = vunpack.c.h.b16 %v107
    %v526 = vunpack.c.l.b16 %v108
    %v527 = vunpack.c.h.b16 %v108
    %v528 = vunpack.c.l.b16 %v109
    %v529 = vunpack.c.h.b16 %v109
    %v530 = vunpack.c.l.b16 %v110
    %v531 = vunpack.c.h.b16 %v110
    %v532 = vunpack.c.l.b16 %v111
    %v533 = vunpack.c.h.b16 %v111
    %v534 = vunpack.c.l.b16 %v112
    %v535 = vunpack.c.h.b16 %v112
    %v536 = vunpack.c.l.b16 %v113
    %v537 = vunpack.c.h.b16 %v113
    %v538 = vunpack.c.l.b16 %v114
    %v539 = vunpack.c.h.b16 %v114
    %v540 = vunpack.c.l.b16 %v115
    %v541 = vunpack.c.h.b16 %v115
    %v542 = vunpack.c.l.b16 %v116
    %v543 = vunpack.c.h.b16 %v116
    %v544 = vunpack.c.l.b16 %v117
    %v545 = vunpack.c.h.b16 %v117
    %v546 = vunpack.c.l.b16 %v118
    %v547 = vunpack.c.h.b16 %v118
    %v548 = vunpack.c.l.b16 %v119
    %v549 = vunpack.c.h.b16 %v119
    %v550 = vunpack.c.l.b16 %v120
    %v551 = vunpack.c.h.b16 %v120
    %v552 = vunpack.c.l.b16 %v121
    %v553 = vunpack.c.h.b16 %v121
    %v554 = vunpack.c.l.b16 %v122
    %v555 = vunpack.c.h.b16 %v122
    %v556 = vunpack.c.l.b16 %v123
    %v557 = vunpack.c.h.b16 %v123
    %v558 = vunpack.c.l.b16 %v124
    %v559 = vunpack.c.h.b16 %v124
    %v560 = vunpack.c.l.b16 %v125
    %v561 = vunpack.c.h.b16 %v125
    %v562 = vunpack.c.l.b16 %v126
    %v563 = vunpack.c.h.b16 %v126
    %v564 = vunpack.c.l.b16 %v127
    %v565 = vunpack.c.h.b16 %v127
    %v566 = vunpack.c.l.b16 %v128
    %v567 = vunpack.c.h.b16 %v128
    %v568 = vunpack.c.l.b16 %v129
    %v569 = vunpack.c.h.b16 %v129
    %v570 = vunpack.c.l.b16 %v130
    %v571 = vunpack.c.h.b16 %v130
    %v572 = vunpack.c.l.b16 %v131
    %v573 = vunpack.c.h.b16 %v131
    %v574 = vunpack.c.l.b16 %v132
    %v575 = vunpack.c.h.b16 %v132
    %v576 = vunpack.c.l.b16 %v133
    %v577 = vunpack.c.h.b16 %v133
    %v578 = vunpack.c.l.b16 %v134
    %v579 = vunpack.c.h.b16 %v134
    %v580 = vunpack.c.l.b16 %v135
    %v581 = vunpack.c.h.b16 %v135
    %v582 = vunpack.c.l.b16 %v136
    %v583 = vunpack.c.h.b16 %v136
    %v584 = vunpack.c.l.b16 %v137
    %v585 = vunpack.c.h.b16 %v137
    %v586 = vunpack.c.l.b16 %v138
    %v587 = vunpack.c.h.b16 %v138
    %v588 = vunpack.c.l.b16 %v139
    %v589 = vunpack.c.h.b16 %v139
    %v590 = vunpack.c.l.b16 %v140
    %v591 = vunpack.c.h.b16 %v140
    %v592 = vunpack.c.l.b16 %v141
    %v593 = vunpack.c.h.b16 %v141
    %v594 = vunpack.c.l.b16 %v142
    %v595 = vunpack.c.h.b16 %v142
    %v596 = vunpack.c.l.b16 %v143
    %v597 = vunpack.c.h.b16 %v143
    %v598 = vunpack.c.l.b16 %v144
    %v599 = vunpack.c.h.b16 %v144
    %v600 = vunpack.c.l.b16 %v145
    %v601 = vunpack.c.h.b16 %v145
    %v602 = vunpack.c.l.b16 %v146
    %v603 = vunpack.c.h.b16 %v146
    %v604 = vunpack.c.l.b16 %v147
    %v605 = vunpack.c.h.b16 %v147
    %v606 = vunpack.c.l.b16 %v148
    %v607 = vunpack.c.h.b16 %v148
    %v608 = vunpack.c.l.b16 %v149
    %v609 = vunpack.c.h.b16 %v149
    %v610 = vunpack.c.l.b16 %v150
    %v611 = vunpack.c.h.b16 %v150
    %v612 = vunpack.c.l.b16 %v151
    %v613 = vunpack.c.h.b16 %v151
    %v614 = vunpack.c.l.b16 %v152
    %v615 = vunpack.c.h.b16 %v152
    %v616 = vunpack.c.l.b16 %v153
    %v617 = vunpack.c.h.b16 %v153
    %v618 = vunpack.c.l.b16 %v154
    %v619 = vunpack.c.h.b16 %v154
    %v620 = vunpack.c.l.b16 %v155
    %v621 = vunpack.c.h.b16 %v155
    %v622 = vunpack.c.l.b16 %v156
    %v623 = vunpack.c.h.b16 %v156
    %v624 = vunpack.c.l.b16 %v157
    %v625 = vunpack.c.h.b16 %v157
    %v626 = vunpack.c.l.b16 %v158
    %v627 = vunpack.c.h.b16 %v158
    %v628 = vunpack.c.l.b16 %v159
    %v629 = vunpack.c.h.b16 %v159
    %v630 = vunpack.c.l.b16 %v160
    %v631 = vunpack.c.h.b16 %v160
    %v632 = vunpack.c.l.b16 %v161
    %v633 = vunpack.c.h.b16 %v161
    %v634 = vunpack.c.l.b16 %v162
    %v635 = vunpack.c.h.b16 %v162
    %v636 = vunpack.c.l.b16 %v163
    %v637 = vunpack.c.h.b16 %v163
    %v638 = vunpack.c.l.b16 %v164
    %v639 = vunpack.c.h.b16 %v164
    %v640 = vunpack.c.l.b16 %v165
    %v641 = vunpack.c.h.b16 %v165
    %v642 = vunpack.c.l.b16 %v166
    %v643 = vunpack.c.h.b16 %v166
    %v644 = vunpack.c.l.b16 %v167
    %v645 = vunpack.c.h.b16 %v167
    %v646 = vunpack.c.l.b16 %v168
    %v647 = vunpack.c.h.b16 %v168
    %v648 = vunpack.c.l.b16 %v169
    %v649 = vunpack.c.h.b16 %v169
    %v650 = vunpack.c.l.b16 %v170
    %v651 = vunpack.c.h.b16 %v170
    %v652 = vunpack.c.l.b16 %v171
    %v653 = vunpack.c.h.b16 %v171
    %v654 = vunpack.c.l.b16 %v172
    %v655 = vunpack.c.h.b16 %v172
    %v656 = vunpack.c.l.b16 %v173
    %v657 = vunpack.c.h.b16 %v173
    %v658 = vunpack.c.l.b16 %v174
    %v659 = vunpack.c.h.b16 %v174
    %v660 = vunpack.c.l.b16 %v175
    %v661 = vunpack.c.h.b16 %v175
    %v662 = vunpack.c.l.b16 %v176
    %v663 = vunpack.c.h.b16 %v176
    %v664 = vunpack.c.l.b16 %v177
    %v665 = vunpack.c.h.b16 %v177
    %v666 = vunpack.c.l.b16 %v178
    %v667 = vunpack.c.h.b16 %v178
    %v668 = vunpack.c.l.b16 %v179
    %v669 = vunpack.c.h.b16 %v179
    %v670 = vunpack.c.l.b16 %v180
    %v671 = vunpack.c.h.b16 %v180
    %v672 = vunpack.c.l.b16 %v181
    %v673 = vunpack.c.h.b16 %v181
    %v674 = vunpack.c.l.b16 %v182
    %v675 = vunpack.c.h.b16 %v182
    %v676 = vunpack.c.l.b16 %v183
    %v677 = vunpack.c.h.b16 %v183
    %v678 = vunpack.c.l.b16 %v184
    %v679 = vunpack.c.h.b16 %v184
    %v680 = vunpack.c.l.b16 %v185
    %v681 = vunpack.c.h.b16 %v185
    %v682 = vunpack.c.l.b16 %v186
    %v683 = vunpack.c.h.b16 %v186
    %v684 = vunpack.c.l.b16 %v187
    %v685 = vunpack.c.h.b16 %v187
    %v686 = vunpack.c.l.b16 %v188
    %v687 = vunpack.c.h.b16 %v188
    %v688 = vunpack.c.l.b16 %v189
    %v689 = vunpack.c.h.b16 %v189
    %v690 = vunpack.c.l.b16 %v190
    %v691 = vunpack.c.h.b16 %v190
    %v692 = vunpack.c.l.b16 %v191
    %v693 = vunpack.c.h.b16 %v191
    %v694 = vunpack.c.l.b16 %v192
    %v695 = vunpack.c.h.b16 %v192
    %v696 = vunpack.c.l.b16 %v193
    %v697 = vunpack.c.h.b16 %v193
    %v698 = vunpack.c.l.b16 %v194
    %v699 = vunpack.c.h.b16 %v194
    %v700 = vunpack.c.l.b16 %v195
    %v701 = vunpack.c.h.b16 %v195
    %v702 = vunpack.c.l.b16 %v196
    %v703 = vunpack.c.h.b16 %v196
    %v704 = vunpack.c.l.b16 %v197
    %v705 = vunpack.c.h.b16 %v197
    %v706 = vunpack.c.l.b16 %v198
    %v707 = vunpack.c.h.b16 %v198
    %v708 = vunpack.c.l.b16 %v199
    %v709 = vunpack.c.h.b16 %v199
    %v710 = vunpack.c.l.b16 %v200
    %v711 = vunpack.c.h.b16 %v200
    %v712 = vunpack.c.l.b16 %v201
    %v713 = vunpack.c.h.b16 %v201
    %v714 = vunpack.c.l.b16 %v202
    %v715 = vunpack.c.h.b16 %v202
    %v716 = vunpack.c.l.b16 %v203
    %v717 = vunpack.c.h.b16 %v203
    %v718 = vunpack.c.l.b16 %v204
    %v719 = vunpack.c.h.b16 %v204
    %v720 = vunpack.c.l.b16 %v205
    %v721 = vunpack.c.h.b16 %v205
    %v722 = vunpack.c.l.b16 %v206
    %v723 = vunpack.c.h.b16 %v206
    %v724 = vunpack.c.l.b16 %v207
    %v725 = vunpack.c.h.b16 %v207
    %v726 = vunpack.c.l.b16 %v208
    %v727 = vunpack.c.h.b16 %v208
    %v728 = vunpack.c.l.b16 %v209
    %v729 = vunpack.c.h.b16 %v209
    %v730 = vunpack.c.l.b16 %v210
    %v731 = vunpack.c.h.b16 %v210
    %v732 = vunpack.c.l.b16 %v211
    %v733 = vunpack.c.h.b16 %v211
    %v734 = vunpack.c.l.b16 %v212
    %v735 = vunpack.c.h.b16 %v212
    %v736 = vunpack.c.l.b16 %v213
    %v737 = vunpack.c.h.b16 %v213
    %v738 = vunpack.c.l.b16 %v214
    %v739 = vunpack.c.h.b16 %v214
    %v740 = vunpack.c.l.b16 %v215
    %v741 = vunpack.c.h.b16 %v215
    %v742 = vunpack.c.l.b16 %v216
    %v743 = vunpack.c.h.b16 %v216
    %v744 = vunpack.c.l.b16 %v217
    %v745 = vunpack.c.h.b16 %v217
    %v746 = vunpack.c.l.b16 %v218
    %v747 = vunpack.c.h.b16 %v218
    %v748 = vunpack.c.l.b16 %v219
    %v749 = vunpack.c.h.b16 %v219
    %v750 = vunpack.c.l.b16 %v220
    %v751 = vunpack.c.h.b16 %v220
    %v752 = vunpack.c.l.b16 %v221
    %v753 = vunpack.c.h.b16 %v221
    %v754 = vunpack.c.l.b16 %v222
    %v755 = vunpack.c.h.b16 %v222
    %v756 = vunpack.c.l.b16 %v223
    %v757 = vunpack.c.h.b16 %v223
    %v758 = vunpack.c.l.b16 %v224
    %v759 = vunpack.c.h.b16 %v224
    %v760 = vunpack.c.l.b16 %v225
    %v761 = vunpack.c.h.b16 %v225
    %v762 = vunpack.c.l.b16 %v226
    %v763 = vunpack.c.h.b16 %v226
    %v764 = vunpack.c.l.b16 %v227
    %v765 = vunpack.c.h.b16 %v227
    %v766 = vunpack.c.l.b16 %v228
    %v767 = vunpack.c.h.b16 %v228
    %v768 = vunpack.c.l.b16 %v229
    %v769 = vunpack.c.h.b16 %v229
    %v770 = vunpack.c.l.b16 %v230
    %v771 = vunpack.c.h.b16 %v230
    %v772 = vunpack.c.l.b16 %v231
    %v773 = vunpack.c.h.b16 %v231
    %v774 = vunpack.c.l.b16 %v232
    %v775 = vunpack.c.h.b16 %v232
    %v776 = vunpack.c.l.b16 %v233
    %v777 = vunpack.c.h.b16 %v233
    %v778 = vunpack.c.l.b16 %v234
    %v779 = vunpack.c.h.b16 %v234
    %v780 = vunpack.c.l.b16 %v235
    %v781 = vunpack.c.h.b16 %v235
    %v782 = vunpack.c.l.b16 %v236
    %v783 = vunpack.c.h.b16 %v236
    %v784 = vunpack.c.l.b16 %v237
    %v785 = vunpack.c.h.b16 %v237
    %v786 = vunpack.c.l.b16 %v238
    %v787 = vunpack.c.h.b16 %v238
    %v788 = vunpack.c.l.b16 %v239
    %v789 = vunpack.c.h.b16 %v239
    %v790 = vunpack.c.l.b16 %v240
    %v791 = vunpack.c.h.b16 %v240
    %v792 = vunpack.c.l.b16 %v241
    %v793 = vunpack.c.h.b16 %v241
    %v794 = vunpack.c.l.b16 %v242
    %v795 = vunpack.c.h.b16 %v242
    %v796 = vunpack.c.l.b16 %v243
    %v797 = vunpack.c.h.b16 %v243
    %v798 = vunpack.c.l.b16 %v244
    %v799 = vunpack.c.h.b16 %v244
    %v800 = vunpack.c.l.b16 %v245
    %v801 = vunpack.c.h.b16 %v245
    %v802 = vunpack.c.l.b16 %v246
    %v803 = vunpack.c.h.b16 %v246
    %v804 = vunpack.c.l.b16 %v247
    %v805 = vunpack.c.h.b16 %v247
    %v806 = vunpack.c.l.b16 %v248
    %v807 = vunpack.c.h.b16 %v248
    %v808 = vunpack.c.l.b16 %v249
    %v809 = vunpack.c.h.b16 %v249
    %v810 = vunpack.c.l.b16 %v250
    %v811 = vunpack.c.h.b16 %v250
    %v812 = vunpack.c.l.b16 %v251
    %v813 = vunpack.c.h.b16 %v251
    %v814 = vunpack.c.l.b16 %v252
    %v815 = vunpack.c.h.b16 %v252
    %v816 = vunpack.c.l.b16 %v253
    %v817 = vunpack.c.h.b16 %v253
    %v818 = vunpack.c.l.b16 %v254
    %v819 = vunpack.c.h.b16 %v254
    %v820 = vunpack.c.l.b16 %v255
    %v821 = vunpack.c.h.b16 %v255
    %v822 = vunpack.c.l.b16 %v256
    %v823 = vunpack.c.h.b16 %v256
    %v824 = vunpack.c.l.b16 %v257
    %v825 = vunpack.c.h.b16 %v257
    %v826 = vunpack.c.l.b16 %v258
    %v827 = vunpack.c.h.b16 %v258
    %v828 = vunpack.c.l.b16 %v259
    %v829 = vunpack.c.h.b16 %v259
    %v830 = vunpack.c.l.b16 %v260
    %v831 = vunpack.c.h.b16 %v260
    %v832 = vunpack.c.l.b16 %v261
    %v833 = vunpack.c.h.b16 %v261
    %v834 = vunpack.c.l.b16 %v262
    %v835 = vunpack.c.h.b16 %v262
    %v836 = vunpack.c.l.b16 %v263
    %v837 = vunpack.c.h.b16 %v263
    %v838 = vunpack.c.l.b16 %v264
    %v839 = vunpack.c.h.b16 %v264
    %v840 = vunpack.c.l.b16 %v265
    %v841 = vunpack.c.h.b16 %v265
    %v842 = vunpack.c.l.b16 %v266
    %v843 = vunpack.c.h.b16 %v266
    %v844 = vunpack.c.l.b16 %v267
    %v845 = vunpack.c.h.b16 %v267
    %v846 = vunpack.c.l.b16 %v268
    %v847 = vunpack.c.h.b16 %v268
    %v848 = vunpack.c.l.b16 %v269
    %v849 = vunpack.c.h.b16 %v269
    %v850 = vunpack.c.l.b16 %v270
    %v851 = vunpack.c.h.b16 %v270
    %v852 = vunpack.c.l.b16 %v271
    %v853 = vunpack.c.h.b16 %v271
    %v854 = vunpack.c.l.b16 %v272
    %v855 = vunpack.c.h.b16 %v272
    %v856 = vunpack.c.l.b16 %v273
    %v857 = vunpack.c.h.b16 %v273
    %v858 = vunpack.c.l.b16 %v274
    %v859 = vunpack.c.h.b16 %v274
    %v860 = vunpack.c.l.b16 %v275
    %v861 = vunpack.c.h.b16 %v275
    %v862 = vunpack.c.l.b16 %v276
    %v863 = vunpack.c.h.b16 %v276
    %v864 = vunpack.c.l.b16 %v277
    %v865 = vunpack.c.h.b16 %v277
    %v866 = vunpack.c.l.b16 %v278
    %v867 = vunpack.c.h.b16 %v278
    %v868 = vunpack.c.l.b16 %v279
    %v869 = vunpack.c.h.b16 %v279
    %v870 = vunpack.c.l.b16 %v280
    %v871 = vunpack.c.h.b16 %v280
    %v872 = vunpack.c.l.b16 %v281
    %v873 = vunpack.c.h.b16 %v281
    %v874 = vunpack.c.l.b16 %v282
    %v875 = vunpack.c.h.b16 %v282
    %v876 = vunpack.c.l.b16 %v283
    %v877 = vunpack.c.h.b16 %v283
    %v878 = vunpack.c.l.b16 %v284
    %v879 = vunpack.c.h.b16 %v284
    %v880 = vunpack.c.l.b16 %v285
    %v881 = vunpack.c.h.b16 %v285
    %v882 = vunpack.c.l.b16 %v286
    %v883 = vunpack.c.h.b16 %v286
    %v884 = vunpack.c.l.b16 %v287
    %v885 = vunpack.c.h.b16 %v287
    %v886 = vpack.c.b16 %v498, %v494
    %v887 = vpack.c.b16 %v499, %v495
    %v888 = vpack.c.b16 %v500, %v496
    %v889 = vpack.c.b16 %v501, %v497
    %v890 = vpack.c.b16 %v506, %v502
    %v891 = vpack.c.b16 %v507, %v503
    %v892 = vpack.c.b16 %v508, %v504
    %v893 = vpack.c.b16 %v509, %v505
    %v894 = vpack.c.b16 %v514, %v510
    %v895 = vpack.c.b16 %v515, %v511
    %v896 = vpack.c.b16 %v516, %v512
    %v897 = vpack.c.b16 %v517, %v513
    %v898 = vpack.c.b16 %v522, %v518
    %v899 = vpack.c.b16 %v523, %v519
    %v900 = vpack.c.b16 %v524, %v520
    %v901 = vpack.c.b16 %v525, %v521
    %v902 = vpack.c.b16 %v530, %v526
    %v903 = vpack.c.b16 %v531, %v527
    %v904 = vpack.c.b16 %v532, %v528
    %v905 = vpack.c.b16 %v533, %v529
    %v906 = vpack.c.b16 %v538, %v534
    %v907 = vpack.c.b16 %v539, %v535
    %v908 = vpack.c.b16 %v540, %v536
    %v909 = vpack.c.b16 %v541, %v537
    %v910 = vpack.c.b16 %v546, %v542
    %v911 = vpack.c.b16 %v547, %v543
    %v912 = vpack.c.b16 %v548, %v544
    %v913 = vpack.c.b16 %v549, %v545
    %v914 = vpack.c.b16 %v554, %v550
    %v915 = vpack.c.b16 %v555, %v551
    %v916 = vpack.c.b16 %v556, %v552
    %v917 = vpack.c.b16 %v557, %v553
    %v918 = vpack.c.b16 %v562, %v558
    %v919 = vpack.c.b16 %v563, %v559
    %v920 = vpack.c.b16 %v564, %v560
    %v921 = vpack.c.b16 %v565, %v561
    %v922 = vpack.c.b16 %v570, %v566
    %v923 = vpack.c.b16 %v571, %v567
    %v924 = vpack.c.b16 %v572, %v568
    %v925 = vpack.c.b16 %v573, %v569
    %v926 = vpack.c.b16 %v578, %v574
    %v927 = vpack.c.b16 %v579, %v575
    %v928 = vpack.c.b16 %v580, %v576
    %v929 = vpack.c.b16 %v581, %v577
    %v930 = vpack.c.b16 %v586, %v582
    %v931 = vpack.c.b16 %v587, %v583
    %v932 = vpack.c.b16 %v588, %v584
    %v933 = vpack.c.b16 %v589, %v585
    %v934 = vpack.c.b16 %v594, %v590
    %v935 = vpack.c.b16 %v595, %v591
    %v936 = vpack.c.b16 %v596, %v592
    %v937 = vpack.c.b16 %v597, %v593
    %v938 = vpack.c.b16 %v602, %v598
    %v939 = vpack.c.b16 %v603, %v599
    %v940 = vpack.c.b16 %v604, %v600
    %v941 = vpack.c.b16 %v605, %v601
    %v942 = vpack.c.b16 %v610, %v606
    %v943 = vpack.c.b16 %v611, %v607
    %v944 = vpack.c.b16 %v612, %v608
    %v945 = vpack.c.b16 %v613, %v609
    %v946 = vpack.c.b16 %v618, %v614
    %v947 = vpack.c.b16 %v619, %v615
    %v948 = vpack.c.b16 %v620, %v616
    %v949 = vpack.c.b16 %v621, %v617
    %v950 = vpack.c.b16 %v626, %v622
    %v951 = vpack.c.b16 %v627, %v623
    %v952 = vpack.c.b16 %v628, %v624
    %v953 = vpack.c.b16 %v629, %v625
    %v954 = vpack.c.b16 %v634, %v630
    %v955 = vpack.c.b16 %v635, %v631
    %v956 = vpack.c.b16 %v636, %v632
    %v957 = vpack.c.b16 %v637, %v633
    %v958 = vpack.c.b16 %v642, %v638
    %v959 = vpack.c.b16 %v643, %v639
    %v960 = vpack.c.b16 %v644, %v640
    %v961 = vpack.c.b16 %v645, %v641
    %v962 = vpack.c.b16 %v650, %v646
    %v963 = vpack.c.b16 %v651, %v647
    %v964 = vpack.c.b16 %v652, %v648
    %v965 = vpack.c.b16 %v653, %v649
    %v966 = vpack.c.b16 %v658, %v654
    %v967 = vpack.c.b16 %v659, %v655
    %v968 = vpack.c.b16 %v660, %v656
    %v969 = vpack.c.b16 %v661, %v657
    %v970 = vpack.c.b16 %v666, %v662
    %v971 = vpack.c.b16 %v667, %v663
    %v972 = vpack.c.b16 %v668, %v664
    %v973 = vpack.c.b16 %v669, %v665
    %v974 = vpack.c.b16 %v674, %v670
    %v975 = vpack.c.b16 %v675, %v671
    %v976 = vpack.c.b16 %v676, %v672
    %v977 = vpack.c.b16 %v677, %v673
    %v978 = vpack.c.b16 %v682, %v678
    %v979 = vpack.c.b16 %v683, %v679
    %v980 = vpack.c.b16 %v684, %v680
    %v981 = vpack.c.b16 %v685, %v681
    %v982 = vpack.c.b16 %v690, %v686
    %v983 = vpack.c.b16 %v691, %v687
    %v984 = vpack.c.b16 %v692, %v688
    %v985 = vpack.c.b16 %v693, %v689
    %v986 = vpack.c.b16 %v698, %v694
    %v987 = vpack.c.b16 %v699, %v695
    %v988 = vpack.c.b16 %v700, %v696
    %v989 = vpack.c.b16 %v701, %v697
    %v990 = vpack.c.b16 %v706, %v702
    %v991 = vpack.c.b16 %v707, %v703
    %v992 = vpack.c.b16 %v708, %v704
    %v993 = vpack.c.b16 %v709, %v705
    %v994 = vpack.c.b16 %v714, %v710
    %v995 = vpack.c.b16 %v715, %v711
    %v996 = vpack.c.b16 %v716, %v712
    %v997 = vpack.c.b16 %v717, %v713
    %v998 = vpack.c.b16 %v722, %v718
    %v999 = vpack.c.b16 %v723, %v719
    %v1000 = vpack.c.b16 %v724, %v720
    %v1001 = vpack.c.b16 %v725, %v721
    %v1002 = vpack.c.b16 %v730, %v726
    %v1003 = vpack.c.b16 %v731, %v727
    %v1004 = vpack.c.b16 %v732, %v728
    %v1005 = vpack.c.b16 %v733, %v729
    %v1006 = vpack.c.b16 %v738, %v734
    %v1007 = vpack.c.b16 %v739, %v735
    %v1008 = vpack.c.b16 %v740, %v736
    %v1009 = vpack.c.b16 %v741, %v737
    %v1010 = vpack.c.b16 %v746, %v742
    %v1011 = vpack.c.b16 %v747, %v743
    %v1012 = vpack.c.b16 %v748, %v744
    %v1013 = vpack.c.b16 %v749, %v745
    %v1014 = vpack.c.b16 %v754, %v750
    %v1015 = vpack.c.b16 %v755, %v751
    %v1016 = vpack.c.b16 %v756, %v752
    %v1017 = vpack.c.b16 %v757, %v753
    %v1018 = vpack.c.b16 %v762, %v758
    %v1019 = vpack.c.b16 %v763, %v759
    %v1020 = vpack.c.b16 %v764, %v760
    %v1021 = vpack.c.b16 %v765, %v761
    %v1022 = vpack.c.b16 %v770, %v766
    %v1023 = vpack.c.b16 %v771, %v767
    %v1024 = vpack.c.b16 %v772, %v768
    %v1025 = vpack.c.b16 %v773, %v769
    %v1026 = vpack.c.b16 %v778, %v774
    %v1027 = vpack.c.b16 %v779, %v775
    %v1028 = vpack.c.b16 %v780, %v776
    %v1029 = vpack.c.b16 %v781, %v777
    %v1030 = vpack.c.b16 %v786, %v782
    %v1031 = vpack.c.b16 %v787, %v783
    %v1032 = vpack.c.b16 %v788, %v784
    %v1033 = vpack.c.b16 %v789, %v785
    %v1034 = vpack.c.b16 %v794, %v790
    %v1035 = vpack.c.b16 %v795, %v791
    %v1036 = vpack.c.b16 %v796, %v792
    %v1037 = vpack.c.b16 %v797, %v793
    %v1038 = vpack.c.b16 %v802, %v798
    %v1039 = vpack.c.b16 %v803, %v799
    %v1040 = vpack.c.b16 %v804, %v800
    %v1041 = vpack.c.b16 %v805, %v801
    %v1042 = vpack.c.b16 %v810, %v806
    %v1043 = vpack.c.b16 %v811, %v807
    %v1044 = vpack.c.b16 %v812, %v808
    %v1045 = vpack.c.b16 %v813, %v809
    %v1046 = vpack.c.b16 %v818, %v814
    %v1047 = vpack.c.b16 %v819, %v815
    %v1048 = vpack.c.b16 %v820, %v816
    %v1049 = vpack.c.b16 %v821, %v817
    %v1050 = vpack.c.b16 %v826, %v822
    %v1051 = vpack.c.b16 %v827, %v823
    %v1052 = vpack.c.b16 %v828, %v824
    %v1053 = vpack.c.b16 %v829, %v825
    %v1054 = vpack.c.b16 %v834, %v830
    %v1055 = vpack.c.b16 %v835, %v831
    %v1056 = vpack.c.b16 %v836, %v832
    %v1057 = vpack.c.b16 %v837, %v833
    %v1058 = vpack.c.b16 %v842, %v838
    %v1059 = vpack.c.b16 %v843, %v839
    %v1060 = vpack.c.b16 %v844, %v840
    %v1061 = vpack.c.b16 %v845, %v841
    %v1062 = vpack.c.b16 %v850, %v846
    %v1063 = vpack.c.b16 %v851, %v847
    %v1064 = vpack.c.b16 %v852, %v848
    %v1065 = vpack.c.b16 %v853, %v849
    %v1066 = vpack.c.b16 %v858, %v854
    %v1067 = vpack.c.b16 %v859, %v855
    %v1068 = vpack.c.b16 %v860, %v856
    %v1069 = vpack.c.b16 %v861, %v857
    %v1070 = vpack.c.b16 %v866, %v862
    %v1071 = vpack.c.b16 %v867, %v863
    %v1072 = vpack.c.b16 %v868, %v864
    %v1073 = vpack.c.b16 %v869, %v865
    %v1074 = vpack.c.b16 %v874, %v870
    %v1075 = vpack.c.b16 %v875, %v871
    %v1076 = vpack.c.b16 %v876, %v872
    %v1077 = vpack.c.b16 %v877, %v873
    %v1078 = vpack.c.b16 %v882, %v878
    %v1079 = vpack.c.b16 %v883, %v879
    %v1080 = vpack.c.b16 %v884, %v880
    %v1081 = vpack.c.b16 %v885, %v881
    %vm1278 = vcmask 130048
    %v1280 = vsel %vm1278, %v91, 0
    %1282 = vmatpush.bf16.msra.mxu0 %v914
    %1283 = vmatpush.bf16.msra.mxu0 %v910
    %1284 = vmatpush.bf16.msra.mxu0 %v906
    %1285 = vmatpush.bf16.msra.mxu0 %v902
    %1286 = vmatpush.bf16.msra.mxu0 %v898
    %1287 = vmatpush.bf16.msra.mxu0 %v894
    %1288 = vmatpush.bf16.msra.mxu0 %v890
    %1289 = vmatpush.bf16.msra.mxu0 %v886
    %1290 = vmatmul.bf16.gmra.mxu0 %v85
    %v1291 = vpop.f32.mrf.mxu0
    %v1292 = vadd.f32 %v290, %v1291
    %v1293 = vpop.f32.mrf.mxu0
    %v1294 = vadd.f32 %v290, %v1293
    %1295 = vdwg.mxu0
    %1296 = vmatpush.bf16.msra.mxu0 %v946
    %1297 = vmatpush.bf16.msra.mxu0 %v942
    %1298 = vmatpush.bf16.msra.mxu0 %v938
    %1299 = vmatpush.bf16.msra.mxu0 %v934
    %1300 = vmatpush.bf16.msra.mxu0 %v930
    %1301 = vmatpush.bf16.msra.mxu0 %v926
    %1302 = vmatpush.bf16.msra.mxu0 %v922
    %1303 = vmatpush.bf16.msra.mxu0 %v918
    %1304 = vmatmul.bf16.gmra.mxu0 %v86
    %v1305 = vpop.f32.mrf.mxu0
    %v1306 = vadd.f32 %v1292, %v1305
    %v1307 = vpop.f32.mrf.mxu0
    %v1308 = vadd.f32 %v1294, %v1307
    %1309 = vdwg.mxu0
    %1310 = vmatpush.bf16.msra.mxu0 %v978
    %1311 = vmatpush.bf16.msra.mxu0 %v974
    %1312 = vmatpush.bf16.msra.mxu0 %v970
    %1313 = vmatpush.bf16.msra.mxu0 %v966
    %1314 = vmatpush.bf16.msra.mxu0 %v962
    %1315 = vmatpush.bf16.msra.mxu0 %v958
    %1316 = vmatpush.bf16.msra.mxu0 %v954
    %1317 = vmatpush.bf16.msra.mxu0 %v950
    %1318 = vmatmul.bf16.gmra.mxu0 %v87
    %v1319 = vpop.f32.mrf.mxu0
    %v1320 = vadd.f32 %v1306, %v1319
    %v1321 = vpop.f32.mrf.mxu0
    %v1322 = vadd.f32 %v1308, %v1321
    %1323 = vdwg.mxu0
    %1324 = vmatpush.bf16.msra.mxu0 %v1010
    %1325 = vmatpush.bf16.msra.mxu0 %v1006
    %1326 = vmatpush.bf16.msra.mxu0 %v1002
    %1327 = vmatpush.bf16.msra.mxu0 %v998
    %1328 = vmatpush.bf16.msra.mxu0 %v994
    %1329 = vmatpush.bf16.msra.mxu0 %v990
    %1330 = vmatpush.bf16.msra.mxu0 %v986
    %1331 = vmatpush.bf16.msra.mxu0 %v982
    %1332 = vmatmul.bf16.gmra.mxu0 %v88
    %v1333 = vpop.f32.mrf.mxu0
    %v1334 = vadd.f32 %v1320, %v1333
    %v1335 = vpop.f32.mrf.mxu0
    %v1336 = vadd.f32 %v1322, %v1335
    %1337 = vdwg.mxu0
    %1338 = vmatpush.bf16.msra.mxu0 %v1042
    %1339 = vmatpush.bf16.msra.mxu0 %v1038
    %1340 = vmatpush.bf16.msra.mxu0 %v1034
    %1341 = vmatpush.bf16.msra.mxu0 %v1030
    %1342 = vmatpush.bf16.msra.mxu0 %v1026
    %1343 = vmatpush.bf16.msra.mxu0 %v1022
    %1344 = vmatpush.bf16.msra.mxu0 %v1018
    %1345 = vmatpush.bf16.msra.mxu0 %v1014
    %1346 = vmatmul.bf16.gmra.mxu0 %v89
    %v1347 = vpop.f32.mrf.mxu0
    %v1348 = vadd.f32 %v1334, %v1347
    %v1349 = vpop.f32.mrf.mxu0
    %v1350 = vadd.f32 %v1336, %v1349
    %1351 = vdwg.mxu0
    %1352 = vmatpush.bf16.msra.mxu0 %v1074
    %1353 = vmatpush.bf16.msra.mxu0 %v1070
    %1354 = vmatpush.bf16.msra.mxu0 %v1066
    %1355 = vmatpush.bf16.msra.mxu0 %v1062
    %1356 = vmatpush.bf16.msra.mxu0 %v1058
    %1357 = vmatpush.bf16.msra.mxu0 %v1054
    %1358 = vmatpush.bf16.msra.mxu0 %v1050
    %1359 = vmatpush.bf16.msra.mxu0 %v1046
    %1360 = vmatmul.bf16.gmra.mxu0 %v90
    %v1361 = vpop.f32.mrf.mxu0
    %v1362 = vadd.f32 %v1348, %v1361
    %v1363 = vpop.f32.mrf.mxu0
    %v1364 = vadd.f32 %v1350, %v1363
    %1365 = vdwg.mxu0
    %1366 = vmatpush.bf16.msra.mxu0 0
    %1367 = vmatpush.bf16.msra.mxu0 0
    %1368 = vmatpush.bf16.msra.mxu0 0
    %1369 = vmatpush.bf16.msra.mxu0 0
    %1370 = vmatpush.bf16.msra.mxu0 0
    %1371 = vmatpush.bf16.msra.mxu0 0
    %1372 = vmatpush.bf16.msra.mxu0 0
    %1373 = vmatpush.bf16.msra.mxu0 %v1078
    %1374 = vmatmul.bf16.gmra.mxu0 %v1280
    %v1375 = vpop.f32.mrf.mxu0
    %v1376 = vadd.f32 %v1362, %v1375
    %v1377 = vpop.f32.mrf.mxu0
    %v1378 = vadd.f32 %v1364, %v1377
    %1379 = vdwg.mxu0
    %1380 = vmatpush.bf16.msra.mxu0 %v915
    %1381 = vmatpush.bf16.msra.mxu0 %v911
    %1382 = vmatpush.bf16.msra.mxu0 %v907
    %1383 = vmatpush.bf16.msra.mxu0 %v903
    %1384 = vmatpush.bf16.msra.mxu0 %v899
    %1385 = vmatpush.bf16.msra.mxu0 %v895
    %1386 = vmatpush.bf16.msra.mxu0 %v891
    %1387 = vmatpush.bf16.msra.mxu0 %v887
    %1388 = vmatmul.bf16.gmra.mxu0 %v85
    %v1389 = vpop.f32.mrf.mxu0
    %v1390 = vadd.f32 %v291, %v1389
    %v1391 = vpop.f32.mrf.mxu0
    %v1392 = vadd.f32 %v291, %v1391
    %1393 = vdwg.mxu0
    %1394 = vmatpush.bf16.msra.mxu0 %v947
    %1395 = vmatpush.bf16.msra.mxu0 %v943
    %1396 = vmatpush.bf16.msra.mxu0 %v939
    %1397 = vmatpush.bf16.msra.mxu0 %v935
    %1398 = vmatpush.bf16.msra.mxu0 %v931
    %1399 = vmatpush.bf16.msra.mxu0 %v927
    %1400 = vmatpush.bf16.msra.mxu0 %v923
    %1401 = vmatpush.bf16.msra.mxu0 %v919
    %1402 = vmatmul.bf16.gmra.mxu0 %v86
    %v1403 = vpop.f32.mrf.mxu0
    %v1404 = vadd.f32 %v1390, %v1403
    %v1405 = vpop.f32.mrf.mxu0
    %v1406 = vadd.f32 %v1392, %v1405
    %1407 = vdwg.mxu0
    %1408 = vmatpush.bf16.msra.mxu0 %v979
    %1409 = vmatpush.bf16.msra.mxu0 %v975
    %1410 = vmatpush.bf16.msra.mxu0 %v971
    %1411 = vmatpush.bf16.msra.mxu0 %v967
    %1412 = vmatpush.bf16.msra.mxu0 %v963
    %1413 = vmatpush.bf16.msra.mxu0 %v959
    %1414 = vmatpush.bf16.msra.mxu0 %v955
    %1415 = vmatpush.bf16.msra.mxu0 %v951
    %1416 = vmatmul.bf16.gmra.mxu0 %v87
    %v1417 = vpop.f32.mrf.mxu0
    %v1418 = vadd.f32 %v1404, %v1417
    %v1419 = vpop.f32.mrf.mxu0
    %v1420 = vadd.f32 %v1406, %v1419
    %1421 = vdwg.mxu0
    %1422 = vmatpush.bf16.msra.mxu0 %v1011
    %1423 = vmatpush.bf16.msra.mxu0 %v1007
    %1424 = vmatpush.bf16.msra.mxu0 %v1003
    %1425 = vmatpush.bf16.msra.mxu0 %v999
    %1426 = vmatpush.bf16.msra.mxu0 %v995
    %1427 = vmatpush.bf16.msra.mxu0 %v991
    %1428 = vmatpush.bf16.msra.mxu0 %v987
    %1429 = vmatpush.bf16.msra.mxu0 %v983
    %1430 = vmatmul.bf16.gmra.mxu0 %v88
    %v1431 = vpop.f32.mrf.mxu0
    %v1432 = vadd.f32 %v1418, %v1431
    %v1433 = vpop.f32.mrf.mxu0
    %v1434 = vadd.f32 %v1420, %v1433
    %1435 = vdwg.mxu0
    %1436 = vmatpush.bf16.msra.mxu0 %v1043
    %1437 = vmatpush.bf16.msra.mxu0 %v1039
    %1438 = vmatpush.bf16.msra.mxu0 %v1035
    %1439 = vmatpush.bf16.msra.mxu0 %v1031
    %1440 = vmatpush.bf16.msra.mxu0 %v1027
    %1441 = vmatpush.bf16.msra.mxu0 %v1023
    %1442 = vmatpush.bf16.msra.mxu0 %v1019
    %1443 = vmatpush.bf16.msra.mxu0 %v1015
    %1444 = vmatmul.bf16.gmra.mxu0 %v89
    %v1445 = vpop.f32.mrf.mxu0
    %v1446 = vadd.f32 %v1432, %v1445
    %v1447 = vpop.f32.mrf.mxu0
    %v1448 = vadd.f32 %v1434, %v1447
    %1449 = vdwg.mxu0
    %1450 = vmatpush.bf16.msra.mxu0 %v1075
    %1451 = vmatpush.bf16.msra.mxu0 %v1071
    %1452 = vmatpush.bf16.msra.mxu0 %v1067
    %1453 = vmatpush.bf16.msra.mxu0 %v1063
    %1454 = vmatpush.bf16.msra.mxu0 %v1059
    %1455 = vmatpush.bf16.msra.mxu0 %v1055
    %1456 = vmatpush.bf16.msra.mxu0 %v1051
    %1457 = vmatpush.bf16.msra.mxu0 %v1047
    %1458 = vmatmul.bf16.gmra.mxu0 %v90
    %v1459 = vpop.f32.mrf.mxu0
    %v1460 = vadd.f32 %v1446, %v1459
    %v1461 = vpop.f32.mrf.mxu0
    %v1462 = vadd.f32 %v1448, %v1461
    %1463 = vdwg.mxu0
    %1464 = vmatpush.bf16.msra.mxu0 0
    %1465 = vmatpush.bf16.msra.mxu0 0
    %1466 = vmatpush.bf16.msra.mxu0 0
    %1467 = vmatpush.bf16.msra.mxu0 0
    %1468 = vmatpush.bf16.msra.mxu0 0
    %1469 = vmatpush.bf16.msra.mxu0 0
    %1470 = vmatpush.bf16.msra.mxu0 0
    %1471 = vmatpush.bf16.msra.mxu0 %v1079
    %1472 = vmatmul.bf16.gmra.mxu0 %v1280
    %v1473 = vpop.f32.mrf.mxu0
    %v1474 = vadd.f32 %v1460, %v1473
    %v1475 = vpop.f32.mrf.mxu0
    %v1476 = vadd.f32 %v1462, %v1475
    %1477 = vdwg.mxu0
    %1478 = vmatpush.bf16.msra.mxu0 %v916
    %1479 = vmatpush.bf16.msra.mxu0 %v912
    %1480 = vmatpush.bf16.msra.mxu0 %v908
    %1481 = vmatpush.bf16.msra.mxu0 %v904
    %1482 = vmatpush.bf16.msra.mxu0 %v900
    %1483 = vmatpush.bf16.msra.mxu0 %v896
    %1484 = vmatpush.bf16.msra.mxu0 %v892
    %1485 = vmatpush.bf16.msra.mxu0 %v888
    %1486 = vmatmul.bf16.gmra.mxu0 %v85
    %v1487 = vpop.f32.mrf.mxu0
    %v1488 = vadd.f32 %v292, %v1487
    %v1489 = vpop.f32.mrf.mxu0
    %v1490 = vadd.f32 %v292, %v1489
    %1491 = vdwg.mxu0
    %1492 = vmatpush.bf16.msra.mxu0 %v948
    %1493 = vmatpush.bf16.msra.mxu0 %v944
    %1494 = vmatpush.bf16.msra.mxu0 %v940
    %1495 = vmatpush.bf16.msra.mxu0 %v936
    %1496 = vmatpush.bf16.msra.mxu0 %v932
    %1497 = vmatpush.bf16.msra.mxu0 %v928
    %1498 = vmatpush.bf16.msra.mxu0 %v924
    %1499 = vmatpush.bf16.msra.mxu0 %v920
    %1500 = vmatmul.bf16.gmra.mxu0 %v86
    %v1501 = vpop.f32.mrf.mxu0
    %v1502 = vadd.f32 %v1488, %v1501
    %v1503 = vpop.f32.mrf.mxu0
    %v1504 = vadd.f32 %v1490, %v1503
    %1505 = vdwg.mxu0
    %1506 = vmatpush.bf16.msra.mxu0 %v980
    %1507 = vmatpush.bf16.msra.mxu0 %v976
    %1508 = vmatpush.bf16.msra.mxu0 %v972
    %1509 = vmatpush.bf16.msra.mxu0 %v968
    %1510 = vmatpush.bf16.msra.mxu0 %v964
    %1511 = vmatpush.bf16.msra.mxu0 %v960
    %1512 = vmatpush.bf16.msra.mxu0 %v956
    %1513 = vmatpush.bf16.msra.mxu0 %v952
    %1514 = vmatmul.bf16.gmra.mxu0 %v87
    %v1515 = vpop.f32.mrf.mxu0
    %v1516 = vadd.f32 %v1502, %v1515
    %v1517 = vpop.f32.mrf.mxu0
    %v1518 = vadd.f32 %v1504, %v1517
    %1519 = vdwg.mxu0
    %1520 = vmatpush.bf16.msra.mxu0 %v1012
    %1521 = vmatpush.bf16.msra.mxu0 %v1008
    %1522 = vmatpush.bf16.msra.mxu0 %v1004
    %1523 = vmatpush.bf16.msra.mxu0 %v1000
    %1524 = vmatpush.bf16.msra.mxu0 %v996
    %1525 = vmatpush.bf16.msra.mxu0 %v992
    %1526 = vmatpush.bf16.msra.mxu0 %v988
    %1527 = vmatpush.bf16.msra.mxu0 %v984
    %1528 = vmatmul.bf16.gmra.mxu0 %v88
    %v1529 = vpop.f32.mrf.mxu0
    %v1530 = vadd.f32 %v1516, %v1529
    %v1531 = vpop.f32.mrf.mxu0
    %v1532 = vadd.f32 %v1518, %v1531
    %1533 = vdwg.mxu0
    %1534 = vmatpush.bf16.msra.mxu0 %v1044
    %1535 = vmatpush.bf16.msra.mxu0 %v1040
    %1536 = vmatpush.bf16.msra.mxu0 %v1036
    %1537 = vmatpush.bf16.msra.mxu0 %v1032
    %1538 = vmatpush.bf16.msra.mxu0 %v1028
    %1539 = vmatpush.bf16.msra.mxu0 %v1024
    %1540 = vmatpush.bf16.msra.mxu0 %v1020
    %1541 = vmatpush.bf16.msra.mxu0 %v1016
    %1542 = vmatmul.bf16.gmra.mxu0 %v89
    %v1543 = vpop.f32.mrf.mxu0
    %v1544 = vadd.f32 %v1530, %v1543
    %v1545 = vpop.f32.mrf.mxu0
    %v1546 = vadd.f32 %v1532, %v1545
    %1547 = vdwg.mxu0
    %1548 = vmatpush.bf16.msra.mxu0 %v1076
    %1549 = vmatpush.bf16.msra.mxu0 %v1072
    %1550 = vmatpush.bf16.msra.mxu0 %v1068
    %1551 = vmatpush.bf16.msra.mxu0 %v1064
    %1552 = vmatpush.bf16.msra.mxu0 %v1060
    %1553 = vmatpush.bf16.msra.mxu0 %v1056
    %1554 = vmatpush.bf16.msra.mxu0 %v1052
    %1555 = vmatpush.bf16.msra.mxu0 %v1048
    %1556 = vmatmul.bf16.gmra.mxu0 %v90
    %v1557 = vpop.f32.mrf.mxu0
    %v1558 = vadd.f32 %v1544, %v1557
    %v1559 = vpop.f32.mrf.mxu0
    %v1560 = vadd.f32 %v1546, %v1559
    %1561 = vdwg.mxu0
    %1562 = vmatpush.bf16.msra.mxu0 0
    %1563 = vmatpush.bf16.msra.mxu0 0
    %1564 = vmatpush.bf16.msra.mxu0 0
    %1565 = vmatpush.bf16.msra.mxu0 0
    %1566 = vmatpush.bf16.msra.mxu0 0
    %1567 = vmatpush.bf16.msra.mxu0 0
    %1568 = vmatpush.bf16.msra.mxu0 0
    %1569 = vmatpush.bf16.msra.mxu0 %v1080
    %1570 = vmatmul.bf16.gmra.mxu0 %v1280
    %v1571 = vpop.f32.mrf.mxu0
    %v1572 = vadd.f32 %v1558, %v1571
    %v1573 = vpop.f32.mrf.mxu0
    %v1574 = vadd.f32 %v1560, %v1573
    %1575 = vdwg.mxu0
    %1576 = vmatpush.bf16.msra.mxu0 %v917
    %1577 = vmatpush.bf16.msra.mxu0 %v913
    %1578 = vmatpush.bf16.msra.mxu0 %v909
    %1579 = vmatpush.bf16.msra.mxu0 %v905
    %1580 = vmatpush.bf16.msra.mxu0 %v901
    %1581 = vmatpush.bf16.msra.mxu0 %v897
    %1582 = vmatpush.bf16.msra.mxu0 %v893
    %1583 = vmatpush.bf16.msra.mxu0 %v889
    %1584 = vmatmul.bf16.gmra.mxu0 %v85
    %v1585 = vpop.f32.mrf.mxu0
    %v1586 = vadd.f32 %v293, %v1585
    %v1587 = vpop.f32.mrf.mxu0
    %v1588 = vadd.f32 %v293, %v1587
    %1589 = vdwg.mxu0
    %1590 = vmatpush.bf16.msra.mxu0 %v949
    %1591 = vmatpush.bf16.msra.mxu0 %v945
    %1592 = vmatpush.bf16.msra.mxu0 %v941
    %1593 = vmatpush.bf16.msra.mxu0 %v937
    %1594 = vmatpush.bf16.msra.mxu0 %v933
    %1595 = vmatpush.bf16.msra.mxu0 %v929
    %1596 = vmatpush.bf16.msra.mxu0 %v925
    %1597 = vmatpush.bf16.msra.mxu0 %v921
    %1598 = vmatmul.bf16.gmra.mxu0 %v86
    %v1599 = vpop.f32.mrf.mxu0
    %v1600 = vadd.f32 %v1586, %v1599
    %v1601 = vpop.f32.mrf.mxu0
    %v1602 = vadd.f32 %v1588, %v1601
    %1603 = vdwg.mxu0
    %1604 = vmatpush.bf16.msra.mxu0 %v981
    %1605 = vmatpush.bf16.msra.mxu0 %v977
    %1606 = vmatpush.bf16.msra.mxu0 %v973
    %1607 = vmatpush.bf16.msra.mxu0 %v969
    %1608 = vmatpush.bf16.msra.mxu0 %v965
    %1609 = vmatpush.bf16.msra.mxu0 %v961
    %1610 = vmatpush.bf16.msra.mxu0 %v957
    %1611 = vmatpush.bf16.msra.mxu0 %v953
    %1612 = vmatmul.bf16.gmra.mxu0 %v87
    %v1613 = vpop.f32.mrf.mxu0
    %v1614 = vadd.f32 %v1600, %v1613
    %v1615 = vpop.f32.mrf.mxu0
    %v1616 = vadd.f32 %v1602, %v1615
    %1617 = vdwg.mxu0
    %1618 = vmatpush.bf16.msra.mxu0 %v1013
    %1619 = vmatpush.bf16.msra.mxu0 %v1009
    %1620 = vmatpush.bf16.msra.mxu0 %v1005
    %1621 = vmatpush.bf16.msra.mxu0 %v1001
    %1622 = vmatpush.bf16.msra.mxu0 %v997
    %1623 = vmatpush.bf16.msra.mxu0 %v993
    %1624 = vmatpush.bf16.msra.mxu0 %v989
    %1625 = vmatpush.bf16.msra.mxu0 %v985
    %1626 = vmatmul.bf16.gmra.mxu0 %v88
    %v1627 = vpop.f32.mrf.mxu0
    %v1628 = vadd.f32 %v1614, %v1627
    %v1629 = vpop.f32.mrf.mxu0
    %v1630 = vadd.f32 %v1616, %v1629
    %1631 = vdwg.mxu0
    %1632 = vmatpush.bf16.msra.mxu0 %v1045
    %1633 = vmatpush.bf16.msra.mxu0 %v1041
    %1634 = vmatpush.bf16.msra.mxu0 %v1037
    %1635 = vmatpush.bf16.msra.mxu0 %v1033
    %1636 = vmatpush.bf16.msra.mxu0 %v1029
    %1637 = vmatpush.bf16.msra.mxu0 %v1025
    %1638 = vmatpush.bf16.msra.mxu0 %v1021
    %1639 = vmatpush.bf16.msra.mxu0 %v1017
    %1640 = vmatmul.bf16.gmra.mxu0 %v89
    %v1641 = vpop.f32.mrf.mxu0
    %v1642 = vadd.f32 %v1628, %v1641
    %v1643 = vpop.f32.mrf.mxu0
    %v1644 = vadd.f32 %v1630, %v1643
    %1645 = vdwg.mxu0
    %1646 = vmatpush.bf16.msra.mxu0 %v1077
    %1647 = vmatpush.bf16.msra.mxu0 %v1073
    %1648 = vmatpush.bf16.msra.mxu0 %v1069
    %1649 = vmatpush.bf16.msra.mxu0 %v1065
    %1650 = vmatpush.bf16.msra.mxu0 %v1061
    %1651 = vmatpush.bf16.msra.mxu0 %v1057
    %1652 = vmatpush.bf16.msra.mxu0 %v1053
    %1653 = vmatpush.bf16.msra.mxu0 %v1049
    %1654 = vmatmul.bf16.gmra.mxu0 %v90
    %v1655 = vpop.f32.mrf.mxu0
    %v1656 = vadd.f32 %v1642, %v1655
    %v1657 = vpop.f32.mrf.mxu0
    %v1658 = vadd.f32 %v1644, %v1657
    %1659 = vdwg.mxu0
    %1660 = vmatpush.bf16.msra.mxu0 0
    %1661 = vmatpush.bf16.msra.mxu0 0
    %1662 = vmatpush.bf16.msra.mxu0 0
    %1663 = vmatpush.bf16.msra.mxu0 0
    %1664 = vmatpush.bf16.msra.mxu0 0
    %1665 = vmatpush.bf16.msra.mxu0 0
    %1666 = vmatpush.bf16.msra.mxu0 0
    %1667 = vmatpush.bf16.msra.mxu0 %v1081
    %1668 = vmatmul.bf16.gmra.mxu0 %v1280
    %v1669 = vpop.f32.mrf.mxu0
    %v1670 = vadd.f32 %v1656, %v1669
    %v1671 = vpop.f32.mrf.mxu0
    %v1672 = vadd.f32 %v1658, %v1671
    %1673 = vdwg.mxu0
    %v1674 = vmax.f32 %v1376, 0.0
    %v1675 = vmax.f32 %v1474, 0.0
    %v1676 = vmax.f32 %v1572, 0.0
    %v1677 = vmax.f32 %v1670, 0.0
    %v1678 = vmax.f32 %v1378, 0.0
    %v1679 = vmax.f32 %v1476, 0.0
    %v1680 = vmax.f32 %v1574, 0.0
    %v1681 = vmax.f32 %v1672, 0.0
    %v1682 = vpack.c.bf16 %v1678, %v1674
    %v1683 = vpack.c.bf16 %v1679, %v1675
    %v1684 = vpack.c.bf16 %v1680, %v1676
    %v1685 = vpack.c.bf16 %v1681, %v1677
    %v1686 = vld [vmem:[#allocation6] sm:$0xff]
    %v1687 = vld [vmem:[#allocation6 + $0x8] sm:$0xff]
    %v1688 = vld [vmem:[#allocation6 + $0x10] sm:$0xff]
    %v1689 = vld [vmem:[#allocation6 + $0x18] sm:$0xff]
    %v1690 = vld [vmem:[#allocation6 + $0x20] sm:$0xff]
    %v1691 = vld [vmem:[#allocation6 + $0x28] sm:$0xff]
    %v1692 = vld [vmem:[#allocation6 + $0x30] sm:$0xff]
    %v1693 = vld [vmem:[#allocation6 + $0x38] sm:$0xff]
    %v1694 = vld [vmem:[#allocation6 + $0x40] sm:$0xff]
    %v1695 = vld [vmem:[#allocation6 + $0x48] sm:$0xff]
    %v1696 = vld [vmem:[#allocation6 + $0x50] sm:$0xff]
    %v1697 = vld [vmem:[#allocation6 + $0x58] sm:$0xff]
    %v1698 = vld [vmem:[#allocation6 + $0x60] sm:$0xff]
    %v1699 = vld [vmem:[#allocation6 + $0x68] sm:$0xff]
    %v1700 = vld [vmem:[#allocation6 + $0x70] sm:$0xff]
    %v1701 = vld [vmem:[#allocation6 + $0x78] sm:$0xff]
    %v1702 = vld [vmem:[#allocation6 + $0x80] sm:$0xff]
    %v1703 = vld [vmem:[#allocation6 + $0x88] sm:$0xff]
    %v1704 = vld [vmem:[#allocation6 + $0x90] sm:$0xff]
    %v1705 = vld [vmem:[#allocation6 + $0x98] sm:$0xff]
    %v1706 = vld [vmem:[#allocation6 + $0xa0] sm:$0xff]
    %v1707 = vld [vmem:[#allocation6 + $0xa8] sm:$0xff]
    %v1708 = vld [vmem:[#allocation6 + $0xb0] sm:$0xff]
    %v1709 = vld [vmem:[#allocation6 + $0xb8] sm:$0xff]
    %v1710 = vld [vmem:[#allocation6 + $0xc0] sm:$0xff]
    %v1711 = vld [vmem:[#allocation6 + $0xc8] sm:$0xff]
    %v1712 = vld [vmem:[#allocation6 + $0xd0] sm:$0xff]
    %v1713 = vld [vmem:[#allocation6 + $0xd8] sm:$0xff]
    %v1714 = vld [vmem:[#allocation6 + $0xe0] sm:$0xff]
    %v1715 = vld [vmem:[#allocation6 + $0xe8] sm:$0xff]
    %v1716 = vld [vmem:[#allocation6 + $0xf0] sm:$0xff]
    %v1717 = vld [vmem:[#allocation6 + $0xf8] sm:$0xff]
    %v1718 = vld [vmem:[#allocation6 + $0x100] sm:$0xff]
    %v1719 = vld [vmem:[#allocation6 + $0x108] sm:$0xff]
    %v1720 = vld [vmem:[#allocation6 + $0x110] sm:$0xff]
    %v1721 = vld [vmem:[#allocation6 + $0x118] sm:$0xff]
    %v1722 = vld [vmem:[#allocation6 + $0x120] sm:$0xff]
    %v1723 = vld [vmem:[#allocation6 + $0x128] sm:$0xff]
    %v1724 = vld [vmem:[#allocation6 + $0x130] sm:$0xff]
    %v1725 = vld [vmem:[#allocation6 + $0x138] sm:$0xff]
    %v1726 = vld [vmem:[#allocation6 + $0x140] sm:$0xff]
    %v1727 = vld [vmem:[#allocation6 + $0x148] sm:$0xff]
    %v1728 = vld [vmem:[#allocation6 + $0x150] sm:$0xff]
    %v1729 = vld [vmem:[#allocation6 + $0x158] sm:$0xff]
    %v1730 = vld [vmem:[#allocation6 + $0x160] sm:$0xff]
    %v1731 = vld [vmem:[#allocation6 + $0x168] sm:$0xff]
    %v1732 = vld [vmem:[#allocation6 + $0x170] sm:$0xff]
    %v1733 = vld [vmem:[#allocation6 + $0x178] sm:$0xff]
    %v1734 = vld [vmem:[#allocation6 + $0x180] sm:$0xff]
    %v1735 = vld [vmem:[#allocation6 + $0x188] sm:$0xff]
    %v1736 = vld [vmem:[#allocation6 + $0x190] sm:$0xff]
    %v1737 = vld [vmem:[#allocation6 + $0x198] sm:$0xff]
    %v1738 = vld [vmem:[#allocation6 + $0x1a0] sm:$0xff]
    %v1739 = vld [vmem:[#allocation6 + $0x1a8] sm:$0xff]
    %v1740 = vld [vmem:[#allocation6 + $0x1b0] sm:$0xff]
    %v1741 = vld [vmem:[#allocation6 + $0x1b8] sm:$0xff]
    %v1742 = vld [vmem:[#allocation6 + $0x1c0] sm:$0xff]
    %v1743 = vld [vmem:[#allocation6 + $0x1c8] sm:$0xff]
    %v1744 = vld [vmem:[#allocation6 + $0x1d0] sm:$0xff]
    %v1745 = vld [vmem:[#allocation6 + $0x1d8] sm:$0xff]
    %v1746 = vld [vmem:[#allocation6 + $0x1e0] sm:$0xff]
    %v1747 = vld [vmem:[#allocation6 + $0x1e8] sm:$0xff]
    %v1748 = vld [vmem:[#allocation6 + $0x1f0] sm:$0xff]
    %v1749 = vld [vmem:[#allocation6 + $0x1f8] sm:$0xff]
    %v1750 = vld [vmem:[%s4] sm:$0x3]
    %v1752 = vperm.slane %v1750, 0
    %v1753 = vperm.slane %v1750, 1
    %v1820 = vunpack.c.l.b16 %v1686
    %v1821 = vunpack.c.h.b16 %v1686
    %v1822 = vunpack.c.l.b16 %v1687
    %v1823 = vunpack.c.h.b16 %v1687
    %v1824 = vunpack.c.l.b16 %v1688
    %v1825 = vunpack.c.h.b16 %v1688
    %v1826 = vunpack.c.l.b16 %v1689
    %v1827 = vunpack.c.h.b16 %v1689
    %v1828 = vunpack.c.l.b16 %v1690
    %v1829 = vunpack.c.h.b16 %v1690
    %v1830 = vunpack.c.l.b16 %v1691
    %v1831 = vunpack.c.h.b16 %v1691
    %v1832 = vunpack.c.l.b16 %v1692
    %v1833 = vunpack.c.h.b16 %v1692
    %v1834 = vunpack.c.l.b16 %v1693
    %v1835 = vunpack.c.h.b16 %v1693
    %v1836 = vunpack.c.l.b16 %v1694
    %v1837 = vunpack.c.h.b16 %v1694
    %v1838 = vunpack.c.l.b16 %v1695
    %v1839 = vunpack.c.h.b16 %v1695
    %v1840 = vunpack.c.l.b16 %v1696
    %v1841 = vunpack.c.h.b16 %v1696
    %v1842 = vunpack.c.l.b16 %v1697
    %v1843 = vunpack.c.h.b16 %v1697
    %v1844 = vunpack.c.l.b16 %v1698
    %v1845 = vunpack.c.h.b16 %v1698
    %v1846 = vunpack.c.l.b16 %v1699
    %v1847 = vunpack.c.h.b16 %v1699
    %v1848 = vunpack.c.l.b16 %v1700
    %v1849 = vunpack.c.h.b16 %v1700
    %v1850 = vunpack.c.l.b16 %v1701
    %v1851 = vunpack.c.h.b16 %v1701
    %v1852 = vunpack.c.l.b16 %v1702
    %v1853 = vunpack.c.h.b16 %v1702
    %v1854 = vunpack.c.l.b16 %v1703
    %v1855 = vunpack.c.h.b16 %v1703
    %v1856 = vunpack.c.l.b16 %v1704
    %v1857 = vunpack.c.h.b16 %v1704
    %v1858 = vunpack.c.l.b16 %v1705
    %v1859 = vunpack.c.h.b16 %v1705
    %v1860 = vunpack.c.l.b16 %v1706
    %v1861 = vunpack.c.h.b16 %v1706
    %v1862 = vunpack.c.l.b16 %v1707
    %v1863 = vunpack.c.h.b16 %v1707
    %v1864 = vunpack.c.l.b16 %v1708
    %v1865 = vunpack.c.h.b16 %v1708
    %v1866 = vunpack.c.l.b16 %v1709
    %v1867 = vunpack.c.h.b16 %v1709
    %v1868 = vunpack.c.l.b16 %v1710
    %v1869 = vunpack.c.h.b16 %v1710
    %v1870 = vunpack.c.l.b16 %v1711
    %v1871 = vunpack.c.h.b16 %v1711
    %v1872 = vunpack.c.l.b16 %v1712
    %v1873 = vunpack.c.h.b16 %v1712
    %v1874 = vunpack.c.l.b16 %v1713
    %v1875 = vunpack.c.h.b16 %v1713
    %v1876 = vunpack.c.l.b16 %v1714
    %v1877 = vunpack.c.h.b16 %v1714
    %v1878 = vunpack.c.l.b16 %v1715
    %v1879 = vunpack.c.h.b16 %v1715
    %v1880 = vunpack.c.l.b16 %v1716
    %v1881 = vunpack.c.h.b16 %v1716
    %v1882 = vunpack.c.l.b16 %v1717
    %v1883 = vunpack.c.h.b16 %v1717
    %v1884 = vunpack.c.l.b16 %v1718
    %v1885 = vunpack.c.h.b16 %v1718
    %v1886 = vunpack.c.l.b16 %v1719
    %v1887 = vunpack.c.h.b16 %v1719
    %v1888 = vunpack.c.l.b16 %v1720
    %v1889 = vunpack.c.h.b16 %v1720
    %v1890 = vunpack.c.l.b16 %v1721
    %v1891 = vunpack.c.h.b16 %v1721
    %v1892 = vunpack.c.l.b16 %v1722
    %v1893 = vunpack.c.h.b16 %v1722
    %v1894 = vunpack.c.l.b16 %v1723
    %v1895 = vunpack.c.h.b16 %v1723
    %v1896 = vunpack.c.l.b16 %v1724
    %v1897 = vunpack.c.h.b16 %v1724
    %v1898 = vunpack.c.l.b16 %v1725
    %v1899 = vunpack.c.h.b16 %v1725
    %v1900 = vunpack.c.l.b16 %v1726
    %v1901 = vunpack.c.h.b16 %v1726
    %v1902 = vunpack.c.l.b16 %v1727
    %v1903 = vunpack.c.h.b16 %v1727
    %v1904 = vunpack.c.l.b16 %v1728
    %v1905 = vunpack.c.h.b16 %v1728
    %v1906 = vunpack.c.l.b16 %v1729
    %v1907 = vunpack.c.h.b16 %v1729
    %v1908 = vunpack.c.l.b16 %v1730
    %v1909 = vunpack.c.h.b16 %v1730
    %v1910 = vunpack.c.l.b16 %v1731
    %v1911 = vunpack.c.h.b16 %v1731
    %v1912 = vunpack.c.l.b16 %v1732
    %v1913 = vunpack.c.h.b16 %v1732
    %v1914 = vunpack.c.l.b16 %v1733
    %v1915 = vunpack.c.h.b16 %v1733
    %v1916 = vunpack.c.l.b16 %v1734
    %v1917 = vunpack.c.h.b16 %v1734
    %v1918 = vunpack.c.l.b16 %v1735
    %v1919 = vunpack.c.h.b16 %v1735
    %v1920 = vunpack.c.l.b16 %v1736
    %v1921 = vunpack.c.h.b16 %v1736
    %v1922 = vunpack.c.l.b16 %v1737
    %v1923 = vunpack.c.h.b16 %v1737
    %v1924 = vunpack.c.l.b16 %v1738
    %v1925 = vunpack.c.h.b16 %v1738
    %v1926 = vunpack.c.l.b16 %v1739
    %v1927 = vunpack.c.h.b16 %v1739
    %v1928 = vunpack.c.l.b16 %v1740
    %v1929 = vunpack.c.h.b16 %v1740
    %v1930 = vunpack.c.l.b16 %v1741
    %v1931 = vunpack.c.h.b16 %v1741
    %v1932 = vunpack.c.l.b16 %v1742
    %v1933 = vunpack.c.h.b16 %v1742
    %v1934 = vunpack.c.l.b16 %v1743
    %v1935 = vunpack.c.h.b16 %v1743
    %v1936 = vunpack.c.l.b16 %v1744
    %v1937 = vunpack.c.h.b16 %v1744
    %v1938 = vunpack.c.l.b16 %v1745
    %v1939 = vunpack.c.h.b16 %v1745
    %v1940 = vunpack.c.l.b16 %v1746
    %v1941 = vunpack.c.h.b16 %v1746
    %v1942 = vunpack.c.l.b16 %v1747
    %v1943 = vunpack.c.h.b16 %v1747
    %v1944 = vunpack.c.l.b16 %v1748
    %v1945 = vunpack.c.h.b16 %v1748
    %v1946 = vunpack.c.l.b16 %v1749
    %v1947 = vunpack.c.h.b16 %v1749
    %v1948 = vpack.c.b16 %v1822, %v1820
    %v1949 = vpack.c.b16 %v1823, %v1821
    %v1950 = vpack.c.b16 %v1826, %v1824
    %v1951 = vpack.c.b16 %v1827, %v1825
    %v1952 = vpack.c.b16 %v1830, %v1828
    %v1953 = vpack.c.b16 %v1831, %v1829
    %v1954 = vpack.c.b16 %v1834, %v1832
    %v1955 = vpack.c.b16 %v1835, %v1833
    %v1956 = vpack.c.b16 %v1838, %v1836
    %v1957 = vpack.c.b16 %v1839, %v1837
    %v1958 = vpack.c.b16 %v1842, %v1840
    %v1959 = vpack.c.b16 %v1843, %v1841
    %v1960 = vpack.c.b16 %v1846, %v1844
    %v1961 = vpack.c.b16 %v1847, %v1845
    %v1962 = vpack.c.b16 %v1850, %v1848
    %v1963 = vpack.c.b16 %v1851, %v1849
    %v1964 = vpack.c.b16 %v1854, %v1852
    %v1965 = vpack.c.b16 %v1855, %v1853
    %v1966 = vpack.c.b16 %v1858, %v1856
    %v1967 = vpack.c.b16 %v1859, %v1857
    %v1968 = vpack.c.b16 %v1862, %v1860
    %v1969 = vpack.c.b16 %v1863, %v1861
    %v1970 = vpack.c.b16 %v1866, %v1864
    %v1971 = vpack.c.b16 %v1867, %v1865
    %v1972 = vpack.c.b16 %v1870, %v1868
    %v1973 = vpack.c.b16 %v1871, %v1869
    %v1974 = vpack.c.b16 %v1874, %v1872
    %v1975 = vpack.c.b16 %v1875, %v1873
    %v1976 = vpack.c.b16 %v1878, %v1876
    %v1977 = vpack.c.b16 %v1879, %v1877
    %v1978 = vpack.c.b16 %v1882, %v1880
    %v1979 = vpack.c.b16 %v1883, %v1881
    %v1980 = vpack.c.b16 %v1886, %v1884
    %v1981 = vpack.c.b16 %v1887, %v1885
    %v1982 = vpack.c.b16 %v1890, %v1888
    %v1983 = vpack.c.b16 %v1891, %v1889
    %v1984 = vpack.c.b16 %v1894, %v1892
    %v1985 = vpack.c.b16 %v1895, %v1893
    %v1986 = vpack.c.b16 %v1898, %v1896
    %v1987 = vpack.c.b16 %v1899, %v1897
    %v1988 = vpack.c.b16 %v1902, %v1900
    %v1989 = vpack.c.b16 %v1903, %v1901
    %v1990 = vpack.c.b16 %v1906, %v1904
    %v1991 = vpack.c.b16 %v1907, %v1905
    %v1992 = vpack.c.b16 %v1910, %v1908
    %v1993 = vpack.c.b16 %v1911, %v1909
    %v1994 = vpack.c.b16 %v1914, %v1912
    %v1995 = vpack.c.b16 %v1915, %v1913
    %v1996 = vpack.c.b16 %v1918, %v1916
    %v1997 = vpack.c.b16 %v1919, %v1917
    %v1998 = vpack.c.b16 %v1922, %v1920
    %v1999 = vpack.c.b16 %v1923, %v1921
    %v2000 = vpack.c.b16 %v1926, %v1924
    %v2001 = vpack.c.b16 %v1927, %v1925
    %v2002 = vpack.c.b16 %v1930, %v1928
    %v2003 = vpack.c.b16 %v1931, %v1929
    %v2004 = vpack.c.b16 %v1934, %v1932
    %v2005 = vpack.c.b16 %v1935, %v1933
    %v2006 = vpack.c.b16 %v1938, %v1936
    %v2007 = vpack.c.b16 %v1939, %v1937
    %v2008 = vpack.c.b16 %v1942, %v1940
    %v2009 = vpack.c.b16 %v1943, %v1941
    %v2010 = vpack.c.b16 %v1946, %v1944
    %v2011 = vpack.c.b16 %v1947, %v1945
    %2076 = vmatpush.bf16.msra.mxu0 %v1962
    %2077 = vmatpush.bf16.msra.mxu0 %v1960
    %2078 = vmatpush.bf16.msra.mxu0 %v1958
    %2079 = vmatpush.bf16.msra.mxu0 %v1956
    %2080 = vmatpush.bf16.msra.mxu0 %v1954
    %2081 = vmatpush.bf16.msra.mxu0 %v1952
    %2082 = vmatpush.bf16.msra.mxu0 %v1950
    %2083 = vmatpush.bf16.msra.mxu0 %v1948
    %2084 = vmatmul.bf16.gmra.mxu0 %v1682
    %v2085 = vpop.f32.mrf.mxu0
    %v2086 = vadd.f32 %v1752, %v2085
    %v2087 = vpop.f32.mrf.mxu0
    %v2088 = vadd.f32 %v1752, %v2087
    %2089 = vdwg.mxu0
    %2090 = vmatpush.bf16.msra.mxu0 %v1978
    %2091 = vmatpush.bf16.msra.mxu0 %v1976
    %2092 = vmatpush.bf16.msra.mxu0 %v1974
    %2093 = vmatpush.bf16.msra.mxu0 %v1972
    %2094 = vmatpush.bf16.msra.mxu0 %v1970
    %2095 = vmatpush.bf16.msra.mxu0 %v1968
    %2096 = vmatpush.bf16.msra.mxu0 %v1966
    %2097 = vmatpush.bf16.msra.mxu0 %v1964
    %2098 = vmatmul.bf16.gmra.mxu0 %v1683
    %v2099 = vpop.f32.mrf.mxu0
    %v2100 = vadd.f32 %v2086, %v2099
    %v2101 = vpop.f32.mrf.mxu0
    %v2102 = vadd.f32 %v2088, %v2101
    %2103 = vdwg.mxu0
    %2104 = vmatpush.bf16.msra.mxu0 %v1994
    %2105 = vmatpush.bf16.msra.mxu0 %v1992
    %2106 = vmatpush.bf16.msra.mxu0 %v1990
    %2107 = vmatpush.bf16.msra.mxu0 %v1988
    %2108 = vmatpush.bf16.msra.mxu0 %v1986
    %2109 = vmatpush.bf16.msra.mxu0 %v1984
    %2110 = vmatpush.bf16.msra.mxu0 %v1982
    %2111 = vmatpush.bf16.msra.mxu0 %v1980
    %2112 = vmatmul.bf16.gmra.mxu0 %v1684
    %v2113 = vpop.f32.mrf.mxu0
    %v2114 = vadd.f32 %v2100, %v2113
    %v2115 = vpop.f32.mrf.mxu0
    %v2116 = vadd.f32 %v2102, %v2115
    %2117 = vdwg.mxu0
    %2118 = vmatpush.bf16.msra.mxu0 %v2010
    %2119 = vmatpush.bf16.msra.mxu0 %v2008
    %2120 = vmatpush.bf16.msra.mxu0 %v2006
    %2121 = vmatpush.bf16.msra.mxu0 %v2004
    %2122 = vmatpush.bf16.msra.mxu0 %v2002
    %2123 = vmatpush.bf16.msra.mxu0 %v2000
    %2124 = vmatpush.bf16.msra.mxu0 %v1998
    %2125 = vmatpush.bf16.msra.mxu0 %v1996
    %2126 = vmatmul.bf16.gmra.mxu0 %v1685
    %v2127 = vpop.f32.mrf.mxu0
    %v2128 = vadd.f32 %v2114, %v2127
    %v2129 = vpop.f32.mrf.mxu0
    %v2130 = vadd.f32 %v2116, %v2129
    %2131 = vdwg.mxu0
    %2132 = vmatpush.bf16.msra.mxu0 %v1963
    %2133 = vmatpush.bf16.msra.mxu0 %v1961
    %2134 = vmatpush.bf16.msra.mxu0 %v1959
    %2135 = vmatpush.bf16.msra.mxu0 %v1957
    %2136 = vmatpush.bf16.msra.mxu0 %v1955
    %2137 = vmatpush.bf16.msra.mxu0 %v1953
    %2138 = vmatpush.bf16.msra.mxu0 %v1951
    %2139 = vmatpush.bf16.msra.mxu0 %v1949
    %2140 = vmatmul.bf16.gmra.mxu0 %v1682
    %v2141 = vpop.f32.mrf.mxu0
    %v2142 = vadd.f32 %v1753, %v2141
    %v2143 = vpop.f32.mrf.mxu0
    %v2144 = vadd.f32 %v1753, %v2143
    %2145 = vdwg.mxu0
    %2146 = vmatpush.bf16.msra.mxu0 %v1979
    %2147 = vmatpush.bf16.msra.mxu0 %v1977
    %2148 = vmatpush.bf16.msra.mxu0 %v1975
    %2149 = vmatpush.bf16.msra.mxu0 %v1973
    %2150 = vmatpush.bf16.msra.mxu0 %v1971
    %2151 = vmatpush.bf16.msra.mxu0 %v1969
    %2152 = vmatpush.bf16.msra.mxu0 %v1967
    %2153 = vmatpush.bf16.msra.mxu0 %v1965
    %2154 = vmatmul.bf16.gmra.mxu0 %v1683
    %v2155 = vpop.f32.mrf.mxu0
    %v2156 = vadd.f32 %v2142, %v2155
    %v2157 = vpop.f32.mrf.mxu0
    %v2158 = vadd.f32 %v2144, %v2157
    %2159 = vdwg.mxu0
    %2160 = vmatpush.bf16.msra.mxu0 %v1995
    %2161 = vmatpush.bf16.msra.mxu0 %v1993
    %2162 = vmatpush.bf16.msra.mxu0 %v1991
    %2163 = vmatpush.bf16.msra.mxu0 %v1989
    %2164 = vmatpush.bf16.msra.mxu0 %v1987
    %2165 = vmatpush.bf16.msra.mxu0 %v1985
    %2166 = vmatpush.bf16.msra.mxu0 %v1983
    %2167 = vmatpush.bf16.msra.mxu0 %v1981
    %2168 = vmatmul.bf16.gmra.mxu0 %v1684
    %v2169 = vpop.f32.mrf.mxu0
    %v2170 = vadd.f32 %v2156, %v2169
    %v2171 = vpop.f32.mrf.mxu0
    %v2172 = vadd.f32 %v2158, %v2171
    %2173 = vdwg.mxu0
    %2174 = vmatpush.bf16.msra.mxu0 %v2011
    %2175 = vmatpush.bf16.msra.mxu0 %v2009
    %2176 = vmatpush.bf16.msra.mxu0 %v2007
    %2177 = vmatpush.bf16.msra.mxu0 %v2005
    %2178 = vmatpush.bf16.msra.mxu0 %v2003
    %2179 = vmatpush.bf16.msra.mxu0 %v2001
    %2180 = vmatpush.bf16.msra.mxu0 %v1999
    %2181 = vmatpush.bf16.msra.mxu0 %v1997
    %2182 = vmatmul.bf16.gmra.mxu0 %v1685
    %v2183 = vpop.f32.mrf.mxu0
    %v2184 = vadd.f32 %v2170, %v2183
    %v2185 = vpop.f32.mrf.mxu0
    %v2186 = vadd.f32 %v2172, %v2185
    %2187 = vdwg.mxu0
    %v2188 = vmul.f32 %v2184, 0.5
    %v2189 = vmul.f32 %v2186, 0.5
    %v2190 = vmul.f32 %v2188, 1.442695
    %v2191 = vpow.pop %v2190
    %v2192 = vmul.f32 %v2189, 1.442695
    %v2193 = vpow.pop %v2192
    %v2194 = vld [vmem:[%s5] sm:$0xff]
    %v2195 = vld [vmem:[%s5 + $0x8] sm:$0xff]
    %v2196 = vmul.f32 %v2191, %v2194
    %v2197 = vmul.f32 %v2193, %v2195
    %v2198 = vadd.f32 %v2128, %v2196
    %v2199 = vadd.f32 %v2130, %v2197
    %2200 = vst [vmem:[%s6] sm:$0xff] %v2198
    %2201 = vst [vmem:[%s6 + $0x10] sm:$0xff] %v2199
    %2202 = vst [vmem:[%s6 + $0x8] sm:$0xff] %v2184
    %2203 = vst [vmem:[%s6 + $0x18] sm:$0xff] %v2186
    // Predicated region
    $region38: #{encoder_forward.1} parent=1 // pred_check
      _
    $region39: #{encoder_forward.1} parent=1 // pred_check_branch
      %2205 = sbr.rel (0) target = $region41
    $region40: #{encoder_forward.1} parent=1 // pred_region
      _
    $region41: #{encoder_forward.1} parent=1 // pred_fallthru
      _
    // Predicated region
    $region42: #{encoder_forward.1} parent=1 // pred_check
      _
    $region43: #{encoder_forward.1} parent=1 // pred_check_branch
      %2207 = sbr.rel (0) target = $region45
    $region44: #{encoder_forward.1} parent=1 // pred_region
      _
    $region45: #{encoder_forward.1} parent=1 // pred_fallthru
      _
    %2208 = vsyncpa [#allocation3], 1
    %2209 = vsyncpa [#allocation5], 1

</llo_original>
